<compile_context>
chip_gen: v7x
topology: tpu7x:2x2x1
jax: 0.10.0
libtpu: 0.0.40
codegen_flags: <defaults>
</compile_context>

<pallas_src>
import jax
import jax.numpy as jnp
from jax import lax
from jax.experimental import pallas as pl
from jax.experimental.pallas import tpu as pltpu

LANES = 128


def _round_up(v, m):
    return ((v + m - 1) // m) * m


def _vmem_budget_bytes():
    """Per-generation VMEM budget: ~96 MiB on v5e/v6e (128 MiB), ~48 MiB on v7x (64 MiB)."""
    cap = 128 * 1024 * 1024
    try:
        cap = int(pltpu.get_tpu_info().vmem_capacity_bytes)
    except Exception:
        pass
    return max(16 * 1024 * 1024, (3 * cap) // 4)


def _choose_edge_tile(E, N, F, D, budget_bytes):
    """Largest multiple-of-8 edge tile whose per-step working set fits the budget."""
    per_edge = (2 * 2 * N        # (TE, 2N) bf16 fused gather mask
                + 2 * N          # (TE, N) bf16 dst mask (reused for scatter)
                + 4 * 2 * F      # (TE, 2F) f32 pre-activations
                + 4 * F          # (TE, F) f32 gated message
                + 2 * D + 8)     # bf16 edge attrs + int32 dst/src (double buffered)
    cap = max(8, (budget_bytes // 3) // max(per_edge, 1))   # /3: dbl-buffer + headroom
    te = min(_round_up(E, 8), (cap // 8) * 8, 4096)
    return max(te, 8)


def _stable_sigmoid(x):
    # Never exponentiates a positive magnitude; divide goes to the EUP slot.
    e = jnp.exp(-jnp.abs(x))
    r = pl.reciprocal(1.0 + e, approx=True)
    return jnp.where(x >= 0.0, r, e * r)


def _softplus(x):
    # matches torch.nn.functional.softplus (beta=1) within f32 precision
    return jnp.logaddexp(x, 0.0)


def poly_forward_kernel(x_ref, ea_ref, dst_ref, src_ref, bat_ref,
                        wgd_ref, wgs_ref, wge_ref, bgc_ref,
                        w1_ref, b1_ref, w2_ref, b2_ref, wo_ref, bo_ref,
                        out_ref, stack_ref, acc_ref):
    k = pl.program_id(0)
    N, F = acc_ref.shape
    TE = ea_ref.shape[0]
    B = out_ref.shape[0]

    # ---- once: zero node accumulator, precompute stacked node projections
    #      [x @ W_dst ; x @ W_src]  -> (2N, 2F), kept in bf16 for the MXU.
    @pl.when(k == 0)
    def _init():
        acc_ref[...] = jnp.zeros_like(acc_ref)
        xb = x_ref[...]                                                 # (N, F) bf16
        p_dst = jnp.dot(xb, wgd_ref[...], preferred_element_type=jnp.float32)
        p_src = jnp.dot(xb, wgs_ref[...], preferred_element_type=jnp.float32)
        stack_ref[...] = jnp.concatenate([p_dst, p_src],
                                         axis=0).astype(stack_ref.dtype)

    # ---- per edge tile: exact 0/1 masks (compare in int32, cast once),
    #      one fused big-K gather matmul, gated message, scatter-add by
    #      reusing g_dst with a TN dot_general (no (N,E) one-hot ever built).
    col_iota = lax.broadcasted_iota(jnp.int32, (TE, N), 1)
    g_dst_f = (col_iota == dst_ref[...]).astype(jnp.float32)            # (TE, N)
    g_src_f = (col_iota == src_ref[...]).astype(jnp.float32)            # (TE, N)
    g_dst = g_dst_f.astype(jnp.bfloat16)
    g_cat = jnp.concatenate([g_dst_f, g_src_f], axis=1).astype(jnp.bfloat16)

    pre = (jnp.dot(g_cat, stack_ref[...], preferred_element_type=jnp.float32)
           + jnp.dot(ea_ref[...], wge_ref[...], preferred_element_type=jnp.float32)
           + bgc_ref[...])                                               # (TE, 2F)

    gate = _stable_sigmoid(pre[:, :F])
    core = _softplus(pre[:, F:])
    msg = (gate * core).astype(jnp.bfloat16)                             # (TE, F)

    # x'_n += sum_e [dst_e == n] * msg_e  ==  g_dst^T @ msg
    acc_ref[...] += lax.dot_general(g_dst, msg, (((0,), (0,)), ((), ())),
                                    preferred_element_type=jnp.float32)

    # ---- finalize: residual, MLP_1, global add pool, MLP_2, out layer ------
    @pl.when(k == pl.num_programs(0) - 1)
    def _epilogue():
        x_new = x_ref[...].astype(jnp.float32) + acc_ref[...]            # (N, F)
        h1 = jnp.maximum(
            jnp.dot(x_new.astype(jnp.bfloat16), w1_ref[...],
                    preferred_element_type=jnp.float32) + b1_ref[...], 0.0)
        pool_iota = lax.broadcasted_iota(jnp.int32, (B, N), 0)
        pool = (pool_iota == bat_ref[...]).astype(jnp.float32).astype(jnp.bfloat16)
        pooled = jnp.dot(pool, h1.astype(jnp.bfloat16),
                         preferred_element_type=jnp.float32)             # (B, H1)
        h2 = jnp.maximum(
            jnp.dot(pooled.astype(jnp.bfloat16), w2_ref[...],
                    preferred_element_type=jnp.float32) + b2_ref[...], 0.0)
        out_ref[...] = (jnp.dot(h2.astype(jnp.bfloat16), wo_ref[...],
                                preferred_element_type=jnp.float32)
                        + bo_ref[...])                                    # (B, 128)


def poly_regression_forward(x, edge_index, edge_attr, batch, params, num_graphs):
    """Trace-time index/weight prep + one edge-blocked Pallas kernel."""
    N, F = x.shape
    E, D = edge_attr.shape
    B = int(num_graphs)

    (wf, bfv), (ws, bsv), (w1, b1), (w2, b2), (wo, bo) = params
    H1, H2 = w1.shape[1], w2.shape[1]

    # Fuse CGConv gate|core projections (Wf|Ws) and split by concat block so
    # z = [x[dst] | x[src] | edge_attr] is never materialized.
    w_gc = jnp.concatenate([wf, ws], axis=1)                 # (2F+D, 2F)
    w_gd = w_gc[:F].astype(jnp.bfloat16)                     # (F, 2F)
    w_gs = w_gc[F:2 * F].astype(jnp.bfloat16)                # (F, 2F)
    w_ge = w_gc[2 * F:].astype(jnp.bfloat16)                 # (D, 2F)
    b_gc = jnp.concatenate([bfv, bsv], axis=1)               # (1, 2F) f32

    # Lane-dense final projection: column 0 is real, 1..127 are zeros.
    wo_pad = jnp.zeros((H2, LANES), jnp.float32).at[:, :1].set(wo).astype(jnp.bfloat16)
    bo_pad = jnp.zeros((1, LANES), jnp.float32).at[:, :1].set(bo)

    # Generation-specific VMEM budget / edge tile (v7x: 64 MiB per TC).
    budget = _vmem_budget_bytes()
    TE = _choose_edge_tile(E, N, F, D, budget)
    E_pad = _round_up(E, TE)

    src = edge_index[0].astype(jnp.int32)
    dst = edge_index[1].astype(jnp.int32)
    ea = edge_attr
    pad = E_pad - E
    if pad:
        oob = jnp.full((pad,), N, jnp.int32)     # never matches a node -> dropped
        src = jnp.concatenate([src, oob])
        dst = jnp.concatenate([dst, oob])
        ea = jnp.concatenate([ea, jnp.zeros((pad, D), ea.dtype)], axis=0)

    x_bf = x.astype(jnp.bfloat16)
    ea_bf = ea.astype(jnp.bfloat16)
    dst_col = dst.reshape(E_pad, 1)
    src_col = src.reshape(E_pad, 1)
    bat_row = batch.astype(jnp.int32).reshape(1, N)
    w1_bf = w1.astype(jnp.bfloat16)
    w2_bf = w2.astype(jnp.bfloat16)

    inputs = (x_bf, ea_bf, dst_col, src_col, bat_row,
              w_gd, w_gs, w_ge, b_gc, w1_bf, b1, w2_bf, b2, wo_pad, bo_pad)

    def _const(arr):
        nd = arr.ndim
        return pl.BlockSpec(arr.shape, lambda *_: (0,) * nd)

    in_specs = [
        _const(x_bf),
        pl.BlockSpec((TE, D), lambda k: (k, 0)),
        pl.BlockSpec((TE, 1), lambda k: (k, 0)),
        pl.BlockSpec((TE, 1), lambda k: (k, 0)),
        _const(bat_row),
        _const(w_gd), _const(w_gs), _const(w_ge), _const(b_gc),
        _const(w1_bf), _const(b1), _const(w2_bf), _const(b2),
        _const(wo_pad), _const(bo_pad),
    ]
    out_spec = pl.BlockSpec((B, LANES), lambda k: (0, 0))
    nblk = E_pad // TE

    flops = 2 * (N * F * 4 * F              # node projections (once)
                 + E_pad * 2 * N * 2 * F    # fused big-K gather matmul
                 + E_pad * D * 2 * F        # edge-attr projection
                 + E_pad * N * F            # scatter-add (g_dst^T @ msg)
                 + N * F * H1 + B * N * H1 + B * H1 * H2 + B * H2 * LANES)
    bytes_accessed = int(sum(int(a.size) * a.dtype.itemsize for a in inputs)
                         + B * LANES * 4)
    cost = pl.CostEstimate(flops=int(flops), transcendentals=int(3 * E_pad * F),
                           bytes_accessed=bytes_accessed)

    out_pad = pl.pallas_call(
        poly_forward_kernel,
        out_shape=jax.ShapeDtypeStruct((B, LANES), jnp.float32),
        grid_spec=pltpu.PrefetchScalarGridSpec(
            num_scalar_prefetch=0,
            grid=(nblk,),
            in_specs=in_specs,
            out_specs=out_spec,
            scratch_shapes=[pltpu.VMEM((2 * N, 2 * F), jnp.bfloat16),   # stacked proj
                            pltpu.VMEM((N, F), jnp.float32)],           # node accum
        ),
        compiler_params=pltpu.CompilerParams(
            dimension_semantics=("arbitrary",),
            vmem_limit_bytes=int(budget)),
        cost_estimate=cost,
    )(*inputs)

    # TODO(synk): for very large N add a node-block axis for MLP_1/pool, a
    # per-graph "parallel" axis (v7x second TC), and replace the (TE, N)
    # one-hot gather with scalar-prefetch row gathers (O(E*F) instead of O(E*N)).
    return out_pad[:, :1]


def _linear_params(key, fan_in, fan_out):
    """Deterministic nn.Linear-style init; weight returned transposed as (in, out)."""
    k = 1.0 / jnp.sqrt(jnp.float32(fan_in))
    kw, kb = jax.random.split(key)
    w = jax.random.uniform(kw, (fan_in, fan_out), minval=-k, maxval=k,
                           dtype=jnp.float32)
    b = jax.random.uniform(kb, (1, fan_out), minval=-k, maxval=k,
                           dtype=jnp.float32)
    return w, b


def _reference_forward(x, edge_index, edge_attr, batch, params, num_graphs):
    """Pure-JAX f32 reference for correctness checking."""
    (wf, bfv), (ws, bsv), (w1, b1), (w2, b2), (wo, bo) = params
    src, dst = edge_index[0], edge_index[1]
    z = jnp.concatenate([x[dst], x[src], edge_attr], axis=1)
    msg = jax.nn.sigmoid(z @ wf + bfv) * jax.nn.softplus(z @ ws + bsv)
    x_new = x + jax.ops.segment_sum(msg, dst, num_segments=x.shape[0])
    h1 = jax.nn.relu(x_new @ w1 + b1)
    pooled = jax.ops.segment_sum(h1, batch, num_segments=num_graphs)
    h2 = jax.nn.relu(pooled @ w2 + b2)
    return h2 @ wo + bo


if __name__ == "__main__":
    # small shapes consistent with the module
    N, E, B = 16, 32, 2          # nodes, edges, graphs in the batch
    F, D = 8, 4                  # n_node_features, n_edge_features
    H1, H2 = 32, 16              # layers_1=[32], layers_2=[16]

    key = jax.random.PRNGKey(0)
    kx, ke, ks, kd, k1, k2, k3, k4, k5 = jax.random.split(key, 9)

    x = jax.random.normal(kx, (N, F), dtype=jnp.float32)
    edge_attr = jax.random.normal(ke, (E, D), dtype=jnp.float32)

    # graph 0 owns nodes [0, 8), graph 1 owns nodes [8, 16); edges stay intra-graph
    batch = jnp.concatenate([jnp.zeros(N // 2, jnp.int32),
                             jnp.ones(N // 2, jnp.int32)])
    src0 = jax.random.randint(ks, (E // 2,), 0, N // 2)
    dst0 = jax.random.randint(kd, (E // 2,), 0, N // 2)
    src = jnp.concatenate([src0, src0 + N // 2])
    dst = jnp.concatenate([dst0, dst0 + N // 2])
    edge_index = jnp.stack([src, dst]).astype(jnp.int32)

    params = (
        _linear_params(k1, 2 * F + D, F),   # CGConv lin_f
        _linear_params(k2, 2 * F + D, F),   # CGConv lin_s
        _linear_params(k3, F, H1),          # mlp_1 Linear
        _linear_params(k4, H1, H2),         # mlp_2 Linear
        _linear_params(k5, H2, 1),          # out_layer
    )

    out = poly_regression_forward(x, edge_index, edge_attr, batch, params, B)
    out = jax.block_until_ready(out)

    ref = _reference_forward(x, edge_index, edge_attr, batch, params, B)
    assert out.shape == (B, 1)
    # bf16 MXU operands (f32 accumulation) -> loosened tolerance vs the f32 ref.
    assert jnp.allclose(out, ref, rtol=5e-2, atol=5e-2), (out, ref)

    print("KERNEL_OK")
</pallas_src>

<mosaic_0001>
module attributes {stable_mosaic.version = 11 : i64} {
  func.func @poly_forward_kernel(%arg0: i32, %arg1: memref<16x8xbf16, #tpu.memory_space<vmem>>, %arg2: memref<32x4xbf16, #tpu.memory_space<vmem>>, %arg3: memref<32x1xi32, #tpu.memory_space<vmem>>, %arg4: memref<32x1xi32, #tpu.memory_space<vmem>>, %arg5: memref<1x16xi32, #tpu.memory_space<vmem>>, %arg6: memref<8x16xbf16, #tpu.memory_space<vmem>>, %arg7: memref<8x16xbf16, #tpu.memory_space<vmem>>, %arg8: memref<4x16xbf16, #tpu.memory_space<vmem>>, %arg9: memref<1x16xf32, #tpu.memory_space<vmem>>, %arg10: memref<8x32xbf16, #tpu.memory_space<vmem>>, %arg11: memref<1x32xf32, #tpu.memory_space<vmem>>, %arg12: memref<32x16xbf16, #tpu.memory_space<vmem>>, %arg13: memref<1x16xf32, #tpu.memory_space<vmem>>, %arg14: memref<16x128xbf16, #tpu.memory_space<vmem>>, %arg15: memref<1x128xf32, #tpu.memory_space<vmem>>, %arg16: memref<2x128xf32, #tpu.memory_space<vmem>>, %arg17: memref<32x16xbf16, #tpu.memory_space<vmem>>, %arg18: memref<16x8xf32, #tpu.memory_space<vmem>>) attributes {dimension_semantics = [#tpu.dimension_semantics<arbitrary>], iteration_bounds = array<i64: 1>, scalar_prefetch = 0 : i64, scratch_operands = 2 : i64, tpu.core_type = #tpu.core_type<tc>, window_params = [{pipeline_mode = #tpu.pipeline_mode<synchronous>, transform_indices = @transform_0, window_bounds = array<i64: 16, 8>}, {transform_indices = @transform_1, window_bounds = array<i64: 32, 4>}, {transform_indices = @transform_2, window_bounds = array<i64: 32, 1>}, {transform_indices = @transform_3, window_bounds = array<i64: 32, 1>}, {pipeline_mode = #tpu.pipeline_mode<synchronous>, transform_indices = @transform_4, window_bounds = array<i64: 1, 16>}, {pipeline_mode = #tpu.pipeline_mode<synchronous>, transform_indices = @transform_5, window_bounds = array<i64: 8, 16>}, {pipeline_mode = #tpu.pipeline_mode<synchronous>, transform_indices = @transform_6, window_bounds = array<i64: 8, 16>}, {pipeline_mode = #tpu.pipeline_mode<synchronous>, transform_indices = @transform_7, window_bounds = array<i64: 4, 16>}, {pipeline_mode = #tpu.pipeline_mode<synchronous>, transform_indices = @transform_8, window_bounds = array<i64: 1, 16>}, {pipeline_mode = #tpu.pipeline_mode<synchronous>, transform_indices = @transform_9, window_bounds = array<i64: 8, 32>}, {pipeline_mode = #tpu.pipeline_mode<synchronous>, transform_indices = @transform_10, window_bounds = array<i64: 1, 32>}, {pipeline_mode = #tpu.pipeline_mode<synchronous>, transform_indices = @transform_11, window_bounds = array<i64: 32, 16>}, {pipeline_mode = #tpu.pipeline_mode<synchronous>, transform_indices = @transform_12, window_bounds = array<i64: 1, 16>}, {pipeline_mode = #tpu.pipeline_mode<synchronous>, transform_indices = @transform_13, window_bounds = array<i64: 16, 128>}, {pipeline_mode = #tpu.pipeline_mode<synchronous>, transform_indices = @transform_14, window_bounds = array<i64: 1, 128>}, {pipeline_mode = #tpu.pipeline_mode<synchronous>, transform_indices = @transform_15, window_bounds = array<i64: 2, 128>}]} {
    %c0_i32 = arith.constant 0 : i32
    %0 = arith.cmpi eq, %arg0, %c0_i32 : i32
    %1 = arith.extui %0 : i1 to i32
    %c0_i32_0 = arith.constant 0 : i32
    %2 = arith.cmpi ne, %1, %c0_i32_0 : i32
    scf.if %2 {
      %cst_25 = arith.constant 0.000000e+00 : f32
      %62 = vector.broadcast %cst_25 : f32 to vector<16x8xf32>
      %c0_26 = arith.constant 0 : index
      %c0_27 = arith.constant 0 : index
      %63 = vector.load %arg18[%c0_26, %c0_27] : memref<16x8xf32, #tpu.memory_space<vmem>>, vector<16x8xf32>
      tpu.vector_store %arg18[%c0_26, %c0_27], %62 {strides = array<i32>} : memref<16x8xf32, #tpu.memory_space<vmem>>, vector<16x8xf32>,
      %c0_28 = arith.constant 0 : index
      %c0_29 = arith.constant 0 : index
      %64 = vector.load %arg1[%c0_28, %c0_29] : memref<16x8xbf16, #tpu.memory_space<vmem>>, vector<16x8xbf16>
      %c0_30 = arith.constant 0 : index
      %c0_31 = arith.constant 0 : index
      %65 = vector.load %arg6[%c0_30, %c0_31] : memref<8x16xbf16, #tpu.memory_space<vmem>>, vector<8x16xbf16>
      %cst_32 = arith.constant dense<0.000000e+00> : vector<16x16xf32>
      %66 = tpu.matmul %64, %65, %cst_32 {dimension_numbers = #tpu.dot_dimension_numbers<[1], [0], [0], [1], [0, 0, 1, 1], [], []>} : vector<16x8xbf16>, vector<8x16xbf16>, vector<16x16xf32> -> vector<16x16xf32>
      %c0_33 = arith.constant 0 : index
      %c0_34 = arith.constant 0 : index
      %67 = vector.load %arg7[%c0_33, %c0_34] : memref<8x16xbf16, #tpu.memory_space<vmem>>, vector<8x16xbf16>
      %cst_35 = arith.constant dense<0.000000e+00> : vector<16x16xf32>
      %68 = tpu.matmul %64, %67, %cst_35 {dimension_numbers = #tpu.dot_dimension_numbers<[1], [0], [0], [1], [0, 0, 1, 1], [], []>} : vector<16x8xbf16>, vector<8x16xbf16>, vector<16x16xf32> -> vector<16x16xf32>
      %69 = tpu.concatenate %66, %68 in 0 : vector<16x16xf32>, vector<16x16xf32> -> vector<32x16xf32>
      %70 = arith.truncf %69 : vector<32x16xf32> to vector<32x16xbf16>
      %c0_36 = arith.constant 0 : index
      %c0_37 = arith.constant 0 : index
      %71 = vector.load %arg17[%c0_36, %c0_37] : memref<32x16xbf16, #tpu.memory_space<vmem>>, vector<32x16xbf16>
      tpu.vector_store %arg17[%c0_36, %c0_37], %70 {strides = array<i32>} : memref<32x16xbf16, #tpu.memory_space<vmem>>, vector<32x16xbf16>,
    } else {
    }
    %3 = tpu.iota {dimensions = array<i32: 1>} : vector<32x16xi32>
    %c0 = arith.constant 0 : index
    %c0_1 = arith.constant 0 : index
    %4 = vector.load %arg3[%c0, %c0_1] : memref<32x1xi32, #tpu.memory_space<vmem>>, vector<32x1xi32>
    %5 = vector.broadcast %4 : vector<32x1xi32> to vector<32x16xi32>
    %6 = arith.cmpi eq, %3, %5 : vector<32x16xi32>
    %7 = arith.extui %6 : vector<32x16xi1> to vector<32x16xi32>
    %8 = arith.sitofp %7 : vector<32x16xi32> to vector<32x16xf32>
    %c0_2 = arith.constant 0 : index
    %c0_3 = arith.constant 0 : index
    %9 = vector.load %arg4[%c0_2, %c0_3] : memref<32x1xi32, #tpu.memory_space<vmem>>, vector<32x1xi32>
    %10 = vector.broadcast %9 : vector<32x1xi32> to vector<32x16xi32>
    %11 = arith.cmpi eq, %3, %10 : vector<32x16xi32>
    %12 = arith.extui %11 : vector<32x16xi1> to vector<32x16xi32>
    %13 = arith.sitofp %12 : vector<32x16xi32> to vector<32x16xf32>
    %14 = arith.truncf %8 : vector<32x16xf32> to vector<32x16xbf16>
    %15 = tpu.concatenate %8, %13 in 1 : vector<32x16xf32>, vector<32x16xf32> -> vector<32x32xf32>
    %16 = arith.truncf %15 : vector<32x32xf32> to vector<32x32xbf16>
    %c0_4 = arith.constant 0 : index
    %c0_5 = arith.constant 0 : index
    %17 = vector.load %arg17[%c0_4, %c0_5] : memref<32x16xbf16, #tpu.memory_space<vmem>>, vector<32x16xbf16>
    %cst = arith.constant dense<0.000000e+00> : vector<32x16xf32>
    %18 = tpu.matmul %16, %17, %cst {dimension_numbers = #tpu.dot_dimension_numbers<[1], [0], [0], [1], [0, 0, 1, 1], [], []>} : vector<32x32xbf16>, vector<32x16xbf16>, vector<32x16xf32> -> vector<32x16xf32>
    %c0_6 = arith.constant 0 : index
    %c0_7 = arith.constant 0 : index
    %19 = vector.load %arg2[%c0_6, %c0_7] : memref<32x4xbf16, #tpu.memory_space<vmem>>, vector<32x4xbf16>
    %c0_8 = arith.constant 0 : index
    %c0_9 = arith.constant 0 : index
    %20 = vector.load %arg8[%c0_8, %c0_9] : memref<4x16xbf16, #tpu.memory_space<vmem>>, vector<4x16xbf16>
    %cst_10 = arith.constant dense<0.000000e+00> : vector<32x16xf32>
    %21 = tpu.matmul %19, %20, %cst_10 {dimension_numbers = #tpu.dot_dimension_numbers<[1], [0], [0], [1], [0, 0, 1, 1], [], []>} : vector<32x4xbf16>, vector<4x16xbf16>, vector<32x16xf32> -> vector<32x16xf32>
    %22 = arith.addf %18, %21 : vector<32x16xf32>
    %c0_11 = arith.constant 0 : index
    %c0_12 = arith.constant 0 : index
    %23 = vector.load %arg9[%c0_11, %c0_12] : memref<1x16xf32, #tpu.memory_space<vmem>>, vector<1x16xf32>
    %24 = vector.broadcast %23 : vector<1x16xf32> to vector<32x16xf32>
    %25 = arith.addf %22, %24 : vector<32x16xf32>
    %26 = vector.extract_strided_slice %25 {offsets = [0, 0], sizes = [32, 8], strides = [1, 1]} : vector<32x16xf32> to vector<32x8xf32>
    %27 = math.absf %26 : vector<32x8xf32>
    %cst_13 = arith.constant 0.000000e+00 : f32
    %28 = vector.broadcast %cst_13 : f32 to vector<32x8xf32>
    %29 = arith.subf %28, %27 : vector<32x8xf32>
    %30 = math.exp %29 : vector<32x8xf32>
    %cst_14 = arith.constant 1.000000e+00 : f32
    %31 = vector.broadcast %cst_14 : f32 to vector<32x8xf32>
    %32 = arith.addf %31, %30 : vector<32x8xf32>
    %33 = tpu.reciprocal %32 {approx = true} : vector<32x8xf32> -> vector<32x8xf32>
    %cst_15 = arith.constant 0.000000e+00 : f32
    %34 = vector.broadcast %cst_15 : f32 to vector<32x8xf32>
    %35 = arith.cmpf oge, %26, %34 : vector<32x8xf32>
    %36 = arith.mulf %30, %33 : vector<32x8xf32>
    %37 = arith.select %35, %33, %36 : vector<32x8xi1>, vector<32x8xf32>
    %38 = vector.extract_strided_slice %25 {offsets = [0, 8], sizes = [32, 8], strides = [1, 1]} : vector<32x16xf32> to vector<32x8xf32>
    %cst_16 = arith.constant 0.000000e+00 : f32
    %39 = vector.broadcast %cst_16 : f32 to vector<32x8xf32>
    %40 = arith.maximumf %38, %39 : vector<32x8xf32>
    %41 = vector.broadcast %cst_16 : f32 to vector<32x8xf32>
    %42 = arith.subf %38, %41 : vector<32x8xf32>
    %43 = arith.cmpf one, %42, %42 : vector<32x8xf32>
    %44 = vector.broadcast %cst_16 : f32 to vector<32x8xf32>
    %45 = arith.addf %38, %44 : vector<32x8xf32>
    %46 = math.absf %42 : vector<32x8xf32>
    %cst_17 = arith.constant 0.000000e+00 : f32
    %47 = vector.broadcast %cst_17 : f32 to vector<32x8xf32>
    %48 = arith.subf %47, %46 : vector<32x8xf32>
    %49 = math.exp %48 : vector<32x8xf32>
    %50 = math.log1p %49 : vector<32x8xf32>
    %51 = arith.addf %40, %50 : vector<32x8xf32>
    %52 = arith.select %43, %45, %51 : vector<32x8xi1>, vector<32x8xf32>
    %53 = arith.mulf %37, %52 : vector<32x8xf32>
    %54 = arith.truncf %53 : vector<32x8xf32> to vector<32x8xbf16>
    %c0_18 = arith.constant 0 : index
    %c0_19 = arith.constant 0 : index
    %55 = vector.load %arg18[%c0_18, %c0_19] : memref<16x8xf32, #tpu.memory_space<vmem>>, vector<16x8xf32>
    %cst_20 = arith.constant dense<0.000000e+00> : vector<16x8xf32>
    %56 = tpu.matmul %14, %54, %cst_20 {dimension_numbers = #tpu.dot_dimension_numbers<[0], [0], [1], [1], [0, 1, 1, 1], [], []>} : vector<32x16xbf16>, vector<32x8xbf16>, vector<16x8xf32> -> vector<16x8xf32>
    %57 = arith.addf %55, %56 : vector<16x8xf32>
    %c0_21 = arith.constant 0 : index
    %c0_22 = arith.constant 0 : index
    %58 = vector.load %arg18[%c0_21, %c0_22] : memref<16x8xf32, #tpu.memory_space<vmem>>, vector<16x8xf32>
    tpu.vector_store %arg18[%c0_21, %c0_22], %57 {strides = array<i32>} : memref<16x8xf32, #tpu.memory_space<vmem>>, vector<16x8xf32>,
    %c0_i32_23 = arith.constant 0 : i32
    %59 = arith.cmpi eq, %arg0, %c0_i32_23 : i32
    %60 = arith.extui %59 : i1 to i32
    %c0_i32_24 = arith.constant 0 : i32
    %61 = arith.cmpi ne, %60, %c0_i32_24 : i32
    scf.if %61 {
      %c0_25 = arith.constant 0 : index
      %c0_26 = arith.constant 0 : index
      %62 = vector.load %arg1[%c0_25, %c0_26] : memref<16x8xbf16, #tpu.memory_space<vmem>>, vector<16x8xbf16>
      %63 = arith.extf %62 : vector<16x8xbf16> to vector<16x8xf32>
      %c0_27 = arith.constant 0 : index
      %c0_28 = arith.constant 0 : index
      %64 = vector.load %arg18[%c0_27, %c0_28] : memref<16x8xf32, #tpu.memory_space<vmem>>, vector<16x8xf32>
      %65 = arith.addf %63, %64 : vector<16x8xf32>
      %66 = arith.truncf %65 : vector<16x8xf32> to vector<16x8xbf16>
      %c0_29 = arith.constant 0 : index
      %c0_30 = arith.constant 0 : index
      %67 = vector.load %arg10[%c0_29, %c0_30] : memref<8x32xbf16, #tpu.memory_space<vmem>>, vector<8x32xbf16>
      %cst_31 = arith.constant dense<0.000000e+00> : vector<16x32xf32>
      %68 = tpu.matmul %66, %67, %cst_31 {dimension_numbers = #tpu.dot_dimension_numbers<[1], [0], [0], [1], [0, 0, 1, 1], [], []>} : vector<16x8xbf16>, vector<8x32xbf16>, vector<16x32xf32> -> vector<16x32xf32>
      %c0_32 = arith.constant 0 : index
      %c0_33 = arith.constant 0 : index
      %69 = vector.load %arg11[%c0_32, %c0_33] : memref<1x32xf32, #tpu.memory_space<vmem>>, vector<1x32xf32>
      %70 = vector.broadcast %69 : vector<1x32xf32> to vector<16x32xf32>
      %71 = arith.addf %68, %70 : vector<16x32xf32>
      %cst_34 = arith.constant 0.000000e+00 : f32
      %72 = vector.broadcast %cst_34 : f32 to vector<16x32xf32>
      %73 = arith.maximumf %71, %72 : vector<16x32xf32>
      %74 = tpu.iota {dimensions = array<i32: 0>} : vector<2x16xi32>
      %c0_35 = arith.constant 0 : index
      %c0_36 = arith.constant 0 : index
      %75 = vector.load %arg5[%c0_35, %c0_36] : memref<1x16xi32, #tpu.memory_space<vmem>>, vector<1x16xi32>
      %76 = vector.broadcast %75 : vector<1x16xi32> to vector<2x16xi32>
      %77 = arith.cmpi eq, %74, %76 : vector<2x16xi32>
      %78 = arith.extui %77 : vector<2x16xi1> to vector<2x16xi32>
      %79 = arith.sitofp %78 : vector<2x16xi32> to vector<2x16xf32>
      %80 = arith.truncf %79 : vector<2x16xf32> to vector<2x16xbf16>
      %81 = arith.truncf %73 : vector<16x32xf32> to vector<16x32xbf16>
      %cst_37 = arith.constant dense<0.000000e+00> : vector<2x32xf32>
      %82 = tpu.matmul %80, %81, %cst_37 {dimension_numbers = #tpu.dot_dimension_numbers<[1], [0], [0], [1], [0, 0, 1, 1], [], []>} : vector<2x16xbf16>, vector<16x32xbf16>, vector<2x32xf32> -> vector<2x32xf32>
      %83 = arith.truncf %82 : vector<2x32xf32> to vector<2x32xbf16>
      %c0_38 = arith.constant 0 : index
      %c0_39 = arith.constant 0 : index
      %84 = vector.load %arg12[%c0_38, %c0_39] : memref<32x16xbf16, #tpu.memory_space<vmem>>, vector<32x16xbf16>
      %cst_40 = arith.constant dense<0.000000e+00> : vector<2x16xf32>
      %85 = tpu.matmul %83, %84, %cst_40 {dimension_numbers = #tpu.dot_dimension_numbers<[1], [0], [0], [1], [0, 0, 1, 1], [], []>} : vector<2x32xbf16>, vector<32x16xbf16>, vector<2x16xf32> -> vector<2x16xf32>
      %c0_41 = arith.constant 0 : index
      %c0_42 = arith.constant 0 : index
      %86 = vector.load %arg13[%c0_41, %c0_42] : memref<1x16xf32, #tpu.memory_space<vmem>>, vector<1x16xf32>
      %87 = vector.broadcast %86 : vector<1x16xf32> to vector<2x16xf32>
      %88 = arith.addf %85, %87 : vector<2x16xf32>
      %cst_43 = arith.constant 0.000000e+00 : f32
      %89 = vector.broadcast %cst_43 : f32 to vector<2x16xf32>
      %90 = arith.maximumf %88, %89 : vector<2x16xf32>
      %91 = arith.truncf %90 : vector<2x16xf32> to vector<2x16xbf16>
      %c0_44 = arith.constant 0 : index
      %c0_45 = arith.constant 0 : index
      %92 = vector.load %arg14[%c0_44, %c0_45] : memref<16x128xbf16, #tpu.memory_space<vmem>>, vector<16x128xbf16>
      %cst_46 = arith.constant dense<0.000000e+00> : vector<2x128xf32>
      %93 = tpu.matmul %91, %92, %cst_46 {dimension_numbers = #tpu.dot_dimension_numbers<[1], [0], [0], [1], [0, 0, 1, 1], [], []>} : vector<2x16xbf16>, vector<16x128xbf16>, vector<2x128xf32> -> vector<2x128xf32>
      %c0_47 = arith.constant 0 : index
      %c0_48 = arith.constant 0 : index
      %94 = vector.load %arg15[%c0_47, %c0_48] : memref<1x128xf32, #tpu.memory_space<vmem>>, vector<1x128xf32>
      %95 = vector.broadcast %94 : vector<1x128xf32> to vector<2x128xf32>
      %96 = arith.addf %93, %95 : vector<2x128xf32>
      %c0_49 = arith.constant 0 : index
      %c0_50 = arith.constant 0 : index
      %97 = vector.load %arg16[%c0_49, %c0_50] : memref<2x128xf32, #tpu.memory_space<vmem>>, vector<2x128xf32>
      tpu.vector_store %arg16[%c0_49, %c0_50], %96 {strides = array<i32>} : memref<2x128xf32, #tpu.memory_space<vmem>>, vector<2x128xf32>,
    } else {
    }
    return
  }
  func.func @transform_0(%arg0: i32) -> (i32, i32) {
    %c0_i32 = arith.constant 0 : i32
    %c0_i32_0 = arith.constant 0 : i32
    %c0_i32_1 = arith.constant 0 : i32
    return %c0_i32, %c0_i32_0 : i32, i32
  }
  func.func @transform_1(%arg0: i32) -> (i32, i32) {
    %c0_i32 = arith.constant 0 : i32
    %c0_i32_0 = arith.constant 0 : i32
    return %arg0, %c0_i32 : i32, i32
  }
  func.func @transform_2(%arg0: i32) -> (i32, i32) {
    %c0_i32 = arith.constant 0 : i32
    %c0_i32_0 = arith.constant 0 : i32
    return %arg0, %c0_i32 : i32, i32
  }
  func.func @transform_3(%arg0: i32) -> (i32, i32) {
    %c0_i32 = arith.constant 0 : i32
    %c0_i32_0 = arith.constant 0 : i32
    return %arg0, %c0_i32 : i32, i32
  }
  func.func @transform_4(%arg0: i32) -> (i32, i32) {
    %c0_i32 = arith.constant 0 : i32
    %c0_i32_0 = arith.constant 0 : i32
    %c0_i32_1 = arith.constant 0 : i32
    return %c0_i32, %c0_i32_0 : i32, i32
  }
  func.func @transform_5(%arg0: i32) -> (i32, i32) {
    %c0_i32 = arith.constant 0 : i32
    %c0_i32_0 = arith.constant 0 : i32
    %c0_i32_1 = arith.constant 0 : i32
    return %c0_i32, %c0_i32_0 : i32, i32
  }
  func.func @transform_6(%arg0: i32) -> (i32, i32) {
    %c0_i32 = arith.constant 0 : i32
    %c0_i32_0 = arith.constant 0 : i32
    %c0_i32_1 = arith.constant 0 : i32
    return %c0_i32, %c0_i32_0 : i32, i32
  }
  func.func @transform_7(%arg0: i32) -> (i32, i32) {
    %c0_i32 = arith.constant 0 : i32
    %c0_i32_0 = arith.constant 0 : i32
    %c0_i32_1 = arith.constant 0 : i32
    return %c0_i32, %c0_i32_0 : i32, i32
  }
  func.func @transform_8(%arg0: i32) -> (i32, i32) {
    %c0_i32 = arith.constant 0 : i32
    %c0_i32_0 = arith.constant 0 : i32
    %c0_i32_1 = arith.constant 0 : i32
    return %c0_i32, %c0_i32_0 : i32, i32
  }
  func.func @transform_9(%arg0: i32) -> (i32, i32) {
    %c0_i32 = arith.constant 0 : i32
    %c0_i32_0 = arith.constant 0 : i32
    %c0_i32_1 = arith.constant 0 : i32
    return %c0_i32, %c0_i32_0 : i32, i32
  }
  func.func @transform_10(%arg0: i32) -> (i32, i32) {
    %c0_i32 = arith.constant 0 : i32
    %c0_i32_0 = arith.constant 0 : i32
    %c0_i32_1 = arith.constant 0 : i32
    return %c0_i32, %c0_i32_0 : i32, i32
  }
  func.func @transform_11(%arg0: i32) -> (i32, i32) {
    %c0_i32 = arith.constant 0 : i32
    %c0_i32_0 = arith.constant 0 : i32
    %c0_i32_1 = arith.constant 0 : i32
    return %c0_i32, %c0_i32_0 : i32, i32
  }
  func.func @transform_12(%arg0: i32) -> (i32, i32) {
    %c0_i32 = arith.constant 0 : i32
    %c0_i32_0 = arith.constant 0 : i32
    %c0_i32_1 = arith.constant 0 : i32
    return %c0_i32, %c0_i32_0 : i32, i32
  }
  func.func @transform_13(%arg0: i32) -> (i32, i32) {
    %c0_i32 = arith.constant 0 : i32
    %c0_i32_0 = arith.constant 0 : i32
    %c0_i32_1 = arith.constant 0 : i32
    return %c0_i32, %c0_i32_0 : i32, i32
  }
  func.func @transform_14(%arg0: i32) -> (i32, i32) {
    %c0_i32 = arith.constant 0 : i32
    %c0_i32_0 = arith.constant 0 : i32
    %c0_i32_1 = arith.constant 0 : i32
    return %c0_i32, %c0_i32_0 : i32, i32
  }
  func.func @transform_15(%arg0: i32) -> (i32, i32) {
    %c0_i32 = arith.constant 0 : i32
    %c0_i32_0 = arith.constant 0 : i32
    %c0_i32_1 = arith.constant 0 : i32
    return %c0_i32, %c0_i32_0 : i32, i32
  }
}

</mosaic_0001>

<llo_original>
// kernel: tpu_custom_call.1
$region0: #{tpu_custom_call.1}
  #allocation0 [shape = 'u32[]', space=smem, size = 0x4, offset = 0x4, fixed_abs, tag = 'smem constant byte address 0x4 - core index']
  #allocation1 [shape = 'u32[144,128]{1,0:T(1,128)}', space=vmem, size = 0x12000, scoped, tag = 'internal scratch']
  #allocation2 [shape = 'bf16[32,16]{1,0:T(16,128)(2,1)}', space=vmem, size = 0x2000, scoped, tag = 'scratch operand']
  #allocation3 [shape = 'f32[16,8]{1,0:T(8,128)}', space=vmem, size = 0x2000, scoped, tag = 'scratch operand']
  %s0 = inlined_call_operand.hbm [shape: bf16[16,8], index: 0, kind: input, shape index: {}]
  %s1 = inlined_call_operand.hbm [shape: bf16[32,4], index: 1, kind: input, shape index: {}]
  %s2 = inlined_call_operand.hbm [shape: s32[32,1], index: 2, kind: input, shape index: {}]
  %s3 = inlined_call_operand.hbm [shape: s32[32,1], index: 3, kind: input, shape index: {}]
  %s4 = inlined_call_operand.hbm [shape: s32[1,16], index: 4, kind: input, shape index: {}]
  %s5 = inlined_call_operand.hbm [shape: bf16[8,16], index: 5, kind: input, shape index: {}]
  %s6 = inlined_call_operand.hbm [shape: bf16[8,16], index: 6, kind: input, shape index: {}]
  %s7 = inlined_call_operand.hbm [shape: bf16[4,16], index: 7, kind: input, shape index: {}]
  %s8 = inlined_call_operand.hbm [shape: f32[1,16], index: 8, kind: input, shape index: {}]
  %s9 = inlined_call_operand.hbm [shape: bf16[8,32], index: 9, kind: input, shape index: {}]
  %s10 = inlined_call_operand.hbm [shape: f32[1,32], index: 10, kind: input, shape index: {}]
  %s11 = inlined_call_operand.hbm [shape: bf16[32,16], index: 11, kind: input, shape index: {}]
  %s12 = inlined_call_operand.hbm [shape: f32[1,16], index: 12, kind: input, shape index: {}]
  %s13 = inlined_call_operand.hbm [shape: bf16[16,128], index: 13, kind: input, shape index: {}]
  %s14 = inlined_call_operand.hbm [shape: f32[1,128], index: 14, kind: input, shape index: {}]
  %s15 = inlined_call_operand.hbm [shape: f32[2,128], index: 15, kind: output, shape index: {}]
  %s16 = sld [smem:[#allocation0]]
  $region138: #{tpu_custom_call.1} parent=0
    _
  %s18 = ssub.s32 1, %s16
  %s19 = scalar_select 0, %s18, %s16
  $region1: #{tpu_custom_call.1} parent=0
    #allocation4 [shape = 'u8[4096]{0}', space=vmem, size = 0x1000, scoped, tag = 'input window, operand 0, single buffered']
    #allocation5 [shape = 's32[1]{0}', space=sflag, size = 0x4, scoped, tag = 'scoped memory for tpu_custom_call.1']
    #allocation6 [shape = 's32[1]{0}', space=sflag, size = 0x4, scoped, tag = 'scoped memory for tpu_custom_call.1']
    #allocation7 [shape = 'u8[8192]{0}', space=vmem, size = 0x2000, scoped, tag = 'input window, operand 1, single buffered']
    #allocation8 [shape = 's32[1]{0}', space=sflag, size = 0x4, scoped, tag = 'scoped memory for tpu_custom_call.1']
    #allocation9 [shape = 'u8[16384]{0}', space=vmem, size = 0x4000, scoped, tag = 'input window, operand 2, single buffered']
    #allocation10 [shape = 'u8[16384]{0}', space=vmem, size = 0x4000, scoped, tag = 'input window, operand 3, single buffered']
    #allocation11 [shape = 's32[1]{0}', space=sflag, size = 0x4, scoped, tag = 'scoped memory for tpu_custom_call.1']
    #allocation12 [shape = 'u8[512]{0}', space=vmem, size = 0x400, scoped, tag = 'input window, operand 4, single buffered']
    #allocation13 [shape = 'u8[2048]{0}', space=vmem, size = 0x800, scoped, tag = 'input window, operand 5, single buffered']
    #allocation14 [shape = 's32[1]{0}', space=sflag, size = 0x4, scoped, tag = 'scoped memory for tpu_custom_call.1']
    #allocation15 [shape = 'u8[2048]{0}', space=vmem, size = 0x800, scoped, tag = 'input window, operand 6, single buffered']
    #allocation16 [shape = 'u8[1024]{0}', space=vmem, size = 0x400, scoped, tag = 'input window, operand 7, single buffered']
    #allocation17 [shape = 's32[1]{0}', space=sflag, size = 0x4, scoped, tag = 'scoped memory for tpu_custom_call.1']
    #allocation18 [shape = 'u8[512]{0}', space=vmem, size = 0x400, scoped, tag = 'input window, operand 8, single buffered']
    #allocation19 [shape = 'u8[2048]{0}', space=vmem, size = 0x800, scoped, tag = 'input window, operand 9, single buffered']
    #allocation20 [shape = 's32[1]{0}', space=sflag, size = 0x4, scoped, tag = 'scoped memory for tpu_custom_call.1']
    #allocation21 [shape = 'u8[512]{0}', space=vmem, size = 0x400, scoped, tag = 'input window, operand 10, single buffered']
    #allocation22 [shape = 'u8[8192]{0}', space=vmem, size = 0x2000, scoped, tag = 'input window, operand 11, single buffered']
    #allocation23 [shape = 's32[1]{0}', space=sflag, size = 0x4, scoped, tag = 'scoped memory for tpu_custom_call.1']
    #allocation24 [shape = 'u8[512]{0}', space=vmem, size = 0x400, scoped, tag = 'input window, operand 12, single buffered']
    #allocation25 [shape = 'u8[4096]{0}', space=vmem, size = 0x1000, scoped, tag = 'input window, operand 13, single buffered']
    #allocation26 [shape = 's32[1]{0}', space=sflag, size = 0x4, scoped, tag = 'scoped memory for tpu_custom_call.1']
    #allocation27 [shape = 'u8[512]{0}', space=vmem, size = 0x400, scoped, tag = 'input window, operand 14, single buffered']
    #allocation28 [shape = 'u8[1024]{0}', space=vmem, size = 0x400, scoped, tag = 'output window, operand 0, single buffered']
    %20 = vsyncpa [#allocation5], 0
    %21 = vsyncpa [#allocation8], 0
    %22 = vsyncpa [#allocation11], 0
    %23 = vsyncpa [#allocation14], 0
    %24 = vsyncpa [#allocation17], 0
    %25 = vsyncpa [#allocation20], 0
    %26 = vsyncpa [#allocation23], 0
    %27 = vsyncpa [#allocation26], 0
    %28 = vsyncpa [#allocation6], 0
    // Predicated region
    $region2: #{tpu_custom_call.1} parent=1 // pred_check
      _
    $region3: #{tpu_custom_call.1} parent=1 // pred_check_branch
      %30 = sbr.rel (0) target = $region5
    $region4: #{tpu_custom_call.1} parent=1 // pred_region
      %s32 = ssub.s32 128, 128
      %33 = vsyncadd [#allocation5], %s32
      %s34 = sshll.u32 [#allocation4], 4
      %s35 = int_to_ptr.vmem [resolvable:$true] %s34
      %40 = dma.hbm_to_vmem [thread:$0]  %s0, 128, %s35, [#allocation5], 64, 64, 4
    $region5: #{tpu_custom_call.1} parent=1 // pred_fallthru
      _
    // Predicated region
    $region6: #{tpu_custom_call.1} parent=1 // pred_check
      _
    $region7: #{tpu_custom_call.1} parent=1 // pred_check_branch
      %42 = sbr.rel (0) target = $region9
    $region8: #{tpu_custom_call.1} parent=1 // pred_region
      %s44 = ssub.s32 256, 256
      %45 = vsyncadd [#allocation8], %s44
      %s46 = sshll.u32 [#allocation7], 4
      %s47 = int_to_ptr.vmem [resolvable:$true] %s46
      %52 = dma.hbm_to_vmem [thread:$0]  %s1, 256, %s47, [#allocation8], 64, 64, 4
    $region9: #{tpu_custom_call.1} parent=1 // pred_fallthru
      _
    // Predicated region
    $region10: #{tpu_custom_call.1} parent=1 // pred_check
      _
    $region11: #{tpu_custom_call.1} parent=1 // pred_check_branch
      %54 = sbr.rel (0) target = $region13
    $region12: #{tpu_custom_call.1} parent=1 // pred_region
      %s56 = ssub.s32 512, 512
      %57 = vsyncadd [#allocation8], %s56
      %s58 = sshll.u32 [#allocation9], 4
      %s59 = int_to_ptr.vmem [resolvable:$true] %s58
      %64 = dma.hbm_to_vmem [thread:$0]  %s2, 512, %s59, [#allocation8], 128, 128, 8
    $region13: #{tpu_custom_call.1} parent=1 // pred_fallthru
      _
    // Predicated region
    $region14: #{tpu_custom_call.1} parent=1 // pred_check
      _
    $region15: #{tpu_custom_call.1} parent=1 // pred_check_branch
      %66 = sbr.rel (0) target = $region17
    $region16: #{tpu_custom_call.1} parent=1 // pred_region
      %s68 = ssub.s32 512, 512
      %69 = vsyncadd [#allocation11], %s68
      %s70 = sshll.u32 [#allocation10], 4
      %s71 = int_to_ptr.vmem [resolvable:$true] %s70
      %76 = dma.hbm_to_vmem [thread:$0]  %s3, 512, %s71, [#allocation11], 128, 128, 8
    $region17: #{tpu_custom_call.1} parent=1 // pred_fallthru
      _
    // Predicated region
    $region18: #{tpu_custom_call.1} parent=1 // pred_check
      _
    $region19: #{tpu_custom_call.1} parent=1 // pred_check_branch
      %78 = sbr.rel (0) target = $region21
    $region20: #{tpu_custom_call.1} parent=1 // pred_region
      %s80 = ssub.s32 16, 16
      %81 = vsyncadd [#allocation11], %s80
      %s83 = sshll.u32 [#allocation12], 4
      %s84 = int_to_ptr.vmem [resolvable:$true] %s83
      %86 = dma.hbm_to_vmem [thread:$0]  %s4, 16, %s84, [#allocation11]
    $region21: #{tpu_custom_call.1} parent=1 // pred_fallthru
      _
    // Predicated region
    $region22: #{tpu_custom_call.1} parent=1 // pred_check
      _
    $region23: #{tpu_custom_call.1} parent=1 // pred_check_branch
      %88 = sbr.rel (0) target = $region25
    $region24: #{tpu_custom_call.1} parent=1 // pred_region
      %s90 = ssub.s32 64, 64
      %91 = vsyncadd [#allocation14], %s90
      %s93 = sshll.u32 [#allocation13], 4
      %s94 = int_to_ptr.vmem [resolvable:$true] %s93
      %96 = dma.hbm_to_vmem [thread:$0]  %s5, 64, %s94, [#allocation14]
    $region25: #{tpu_custom_call.1} parent=1 // pred_fallthru
      _
    // Predicated region
    $region26: #{tpu_custom_call.1} parent=1 // pred_check
      _
    $region27: #{tpu_custom_call.1} parent=1 // pred_check_branch
      %98 = sbr.rel (0) target = $region29
    $region28: #{tpu_custom_call.1} parent=1 // pred_region
      %s100 = ssub.s32 64, 64
      %101 = vsyncadd [#allocation14], %s100
      %s103 = sshll.u32 [#allocation15], 4
      %s104 = int_to_ptr.vmem [resolvable:$true] %s103
      %106 = dma.hbm_to_vmem [thread:$0]  %s6, 64, %s104, [#allocation14]
    $region29: #{tpu_custom_call.1} parent=1 // pred_fallthru
      _
    // Predicated region
    $region30: #{tpu_custom_call.1} parent=1 // pred_check
      _
    $region31: #{tpu_custom_call.1} parent=1 // pred_check_branch
      %108 = sbr.rel (0) target = $region33
    $region32: #{tpu_custom_call.1} parent=1 // pred_region
      %s110 = ssub.s32 32, 32
      %111 = vsyncadd [#allocation17], %s110
      %s113 = sshll.u32 [#allocation16], 4
      %s114 = int_to_ptr.vmem [resolvable:$true] %s113
      %116 = dma.hbm_to_vmem [thread:$0]  %s7, 32, %s114, [#allocation17]
    $region33: #{tpu_custom_call.1} parent=1 // pred_fallthru
      _
    // Predicated region
    $region34: #{tpu_custom_call.1} parent=1 // pred_check
      _
    $region35: #{tpu_custom_call.1} parent=1 // pred_check_branch
      %118 = sbr.rel (0) target = $region37
    $region36: #{tpu_custom_call.1} parent=1 // pred_region
      %s120 = ssub.s32 16, 16
      %121 = vsyncadd [#allocation17], %s120
      %s123 = sshll.u32 [#allocation18], 4
      %s124 = int_to_ptr.vmem [resolvable:$true] %s123
      %126 = dma.hbm_to_vmem [thread:$0]  %s8, 16, %s124, [#allocation17]
    $region37: #{tpu_custom_call.1} parent=1 // pred_fallthru
      _
    // Predicated region
    $region38: #{tpu_custom_call.1} parent=1 // pred_check
      _
    $region39: #{tpu_custom_call.1} parent=1 // pred_check_branch
      %128 = sbr.rel (0) target = $region41
    $region40: #{tpu_custom_call.1} parent=1 // pred_region
      %s130 = ssub.s32 64, 64
      %131 = vsyncadd [#allocation20], %s130
      %s133 = sshll.u32 [#allocation19], 4
      %s134 = int_to_ptr.vmem [resolvable:$true] %s133
      %136 = dma.hbm_to_vmem [thread:$0]  %s9, 64, %s134, [#allocation20]
    $region41: #{tpu_custom_call.1} parent=1 // pred_fallthru
      _
    // Predicated region
    $region42: #{tpu_custom_call.1} parent=1 // pred_check
      _
    $region43: #{tpu_custom_call.1} parent=1 // pred_check_branch
      %138 = sbr.rel (0) target = $region45
    $region44: #{tpu_custom_call.1} parent=1 // pred_region
      %s140 = ssub.s32 16, 16
      %141 = vsyncadd [#allocation20], %s140
      %s143 = sshll.u32 [#allocation21], 4
      %s144 = int_to_ptr.vmem [resolvable:$true] %s143
      %146 = dma.hbm_to_vmem [thread:$0]  %s10, 16, %s144, [#allocation20]
    $region45: #{tpu_custom_call.1} parent=1 // pred_fallthru
      _
    // Predicated region
    $region46: #{tpu_custom_call.1} parent=1 // pred_check
      _
    $region47: #{tpu_custom_call.1} parent=1 // pred_check_branch
      %148 = sbr.rel (0) target = $region49
    $region48: #{tpu_custom_call.1} parent=1 // pred_region
      %s150 = ssub.s32 256, 256
      %151 = vsyncadd [#allocation23], %s150
      %s152 = sshll.u32 [#allocation22], 4
      %s153 = int_to_ptr.vmem [resolvable:$true] %s152
      %158 = dma.hbm_to_vmem [thread:$0]  %s11, 256, %s153, [#allocation23], 64, 64, 4
    $region49: #{tpu_custom_call.1} parent=1 // pred_fallthru
      _
    // Predicated region
    $region50: #{tpu_custom_call.1} parent=1 // pred_check
      _
    $region51: #{tpu_custom_call.1} parent=1 // pred_check_branch
      %160 = sbr.rel (0) target = $region53
    $region52: #{tpu_custom_call.1} parent=1 // pred_region
      %s162 = ssub.s32 16, 16
      %163 = vsyncadd [#allocation23], %s162
      %s165 = sshll.u32 [#allocation24], 4
      %s166 = int_to_ptr.vmem [resolvable:$true] %s165
      %168 = dma.hbm_to_vmem [thread:$0]  %s12, 16, %s166, [#allocation23]
    $region53: #{tpu_custom_call.1} parent=1 // pred_fallthru
      _
    // Predicated region
    $region54: #{tpu_custom_call.1} parent=1 // pred_check
      _
    $region55: #{tpu_custom_call.1} parent=1 // pred_check_branch
      %170 = sbr.rel (0) target = $region57
    $region56: #{tpu_custom_call.1} parent=1 // pred_region
      %s172 = ssub.s32 128, 128
      %173 = vsyncadd [#allocation26], %s172
      %s174 = sshll.u32 [#allocation25], 4
      %s175 = int_to_ptr.vmem [resolvable:$true] %s174
      %180 = dma.hbm_to_vmem [thread:$0]  %s13, 128, %s175, [#allocation26], 64, 64, 4
    $region57: #{tpu_custom_call.1} parent=1 // pred_fallthru
      _
    // Predicated region
    $region58: #{tpu_custom_call.1} parent=1 // pred_check
      _
    $region59: #{tpu_custom_call.1} parent=1 // pred_check_branch
      %182 = sbr.rel (0) target = $region61
    $region60: #{tpu_custom_call.1} parent=1 // pred_region
      %s184 = ssub.s32 16, 16
      %185 = vsyncadd [#allocation26], %s184
      %s187 = sshll.u32 [#allocation27], 4
      %s188 = int_to_ptr.vmem [resolvable:$true] %s187
      %190 = dma.hbm_to_vmem [thread:$0]  %s14, 16, %s188, [#allocation26]
    $region61: #{tpu_custom_call.1} parent=1 // pred_fallthru
      _
    // Predicated region
    $region62: #{tpu_custom_call.1} parent=1 // pred_check
      _
    $region63: #{tpu_custom_call.1} parent=1 // pred_check_branch
      %192 = sbr.rel (0) target = $region65
    $region64: #{tpu_custom_call.1} parent=1 // pred_region
      %193 = dma.done [#allocation5], 128
    $region65: #{tpu_custom_call.1} parent=1 // pred_fallthru
      _
    // Predicated region
    $region66: #{tpu_custom_call.1} parent=1 // pred_check
      _
    $region67: #{tpu_custom_call.1} parent=1 // pred_check_branch
      %195 = sbr.rel (0) target = $region69
    $region68: #{tpu_custom_call.1} parent=1 // pred_region
      %196 = dma.done [#allocation8], 256
    $region69: #{tpu_custom_call.1} parent=1 // pred_fallthru
      _
    // Predicated region
    $region70: #{tpu_custom_call.1} parent=1 // pred_check
      _
    $region71: #{tpu_custom_call.1} parent=1 // pred_check_branch
      %198 = sbr.rel (0) target = $region73
    $region72: #{tpu_custom_call.1} parent=1 // pred_region
      %199 = dma.done [#allocation8], 512
    $region73: #{tpu_custom_call.1} parent=1 // pred_fallthru
      _
    // Predicated region
    $region74: #{tpu_custom_call.1} parent=1 // pred_check
      _
    $region75: #{tpu_custom_call.1} parent=1 // pred_check_branch
      %201 = sbr.rel (0) target = $region77
    $region76: #{tpu_custom_call.1} parent=1 // pred_region
      %202 = dma.done [#allocation11], 512
    $region77: #{tpu_custom_call.1} parent=1 // pred_fallthru
      _
    // Predicated region
    $region78: #{tpu_custom_call.1} parent=1 // pred_check
      _
    $region79: #{tpu_custom_call.1} parent=1 // pred_check_branch
      %204 = sbr.rel (0) target = $region81
    $region80: #{tpu_custom_call.1} parent=1 // pred_region
      %205 = dma.done [#allocation11], 16
    $region81: #{tpu_custom_call.1} parent=1 // pred_fallthru
      _
    // Predicated region
    $region82: #{tpu_custom_call.1} parent=1 // pred_check
      _
    $region83: #{tpu_custom_call.1} parent=1 // pred_check_branch
      %207 = sbr.rel (0) target = $region85
    $region84: #{tpu_custom_call.1} parent=1 // pred_region
      %208 = dma.done [#allocation14], 64
    $region85: #{tpu_custom_call.1} parent=1 // pred_fallthru
      _
    // Predicated region
    $region86: #{tpu_custom_call.1} parent=1 // pred_check
      _
    $region87: #{tpu_custom_call.1} parent=1 // pred_check_branch
      %210 = sbr.rel (0) target = $region89
    $region88: #{tpu_custom_call.1} parent=1 // pred_region
      %211 = dma.done [#allocation14], 64
    $region89: #{tpu_custom_call.1} parent=1 // pred_fallthru
      _
    // Predicated region
    $region90: #{tpu_custom_call.1} parent=1 // pred_check
      _
    $region91: #{tpu_custom_call.1} parent=1 // pred_check_branch
      %213 = sbr.rel (0) target = $region93
    $region92: #{tpu_custom_call.1} parent=1 // pred_region
      %214 = dma.done [#allocation17], 32
    $region93: #{tpu_custom_call.1} parent=1 // pred_fallthru
      _
    // Predicated region
    $region94: #{tpu_custom_call.1} parent=1 // pred_check
      _
    $region95: #{tpu_custom_call.1} parent=1 // pred_check_branch
      %216 = sbr.rel (0) target = $region97
    $region96: #{tpu_custom_call.1} parent=1 // pred_region
      %217 = dma.done [#allocation17], 16
    $region97: #{tpu_custom_call.1} parent=1 // pred_fallthru
      _
    // Predicated region
    $region98: #{tpu_custom_call.1} parent=1 // pred_check
      _
    $region99: #{tpu_custom_call.1} parent=1 // pred_check_branch
      %219 = sbr.rel (0) target = $region101
    $region100: #{tpu_custom_call.1} parent=1 // pred_region
      %220 = dma.done [#allocation20], 64
    $region101: #{tpu_custom_call.1} parent=1 // pred_fallthru
      _
    // Predicated region
    $region102: #{tpu_custom_call.1} parent=1 // pred_check
      _
    $region103: #{tpu_custom_call.1} parent=1 // pred_check_branch
      %222 = sbr.rel (0) target = $region105
    $region104: #{tpu_custom_call.1} parent=1 // pred_region
      %223 = dma.done [#allocation20], 16
    $region105: #{tpu_custom_call.1} parent=1 // pred_fallthru
      _
    // Predicated region
    $region106: #{tpu_custom_call.1} parent=1 // pred_check
      _
    $region107: #{tpu_custom_call.1} parent=1 // pred_check_branch
      %225 = sbr.rel (0) target = $region109
    $region108: #{tpu_custom_call.1} parent=1 // pred_region
      %226 = dma.done [#allocation23], 256
    $region109: #{tpu_custom_call.1} parent=1 // pred_fallthru
      _
    // Predicated region
    $region110: #{tpu_custom_call.1} parent=1 // pred_check
      _
    $region111: #{tpu_custom_call.1} parent=1 // pred_check_branch
      %228 = sbr.rel (0) target = $region113
    $region112: #{tpu_custom_call.1} parent=1 // pred_region
      %229 = dma.done [#allocation23], 16
    $region113: #{tpu_custom_call.1} parent=1 // pred_fallthru
      _
    // Predicated region
    $region114: #{tpu_custom_call.1} parent=1 // pred_check
      _
    $region115: #{tpu_custom_call.1} parent=1 // pred_check_branch
      %231 = sbr.rel (0) target = $region117
    $region116: #{tpu_custom_call.1} parent=1 // pred_region
      %232 = dma.done [#allocation26], 128
    $region117: #{tpu_custom_call.1} parent=1 // pred_fallthru
      _
    // Predicated region
    $region118: #{tpu_custom_call.1} parent=1 // pred_check
      _
    $region119: #{tpu_custom_call.1} parent=1 // pred_check_branch
      %234 = sbr.rel (0) target = $region121
    $region120: #{tpu_custom_call.1} parent=1 // pred_region
      %235 = dma.done [#allocation26], 16
    $region121: #{tpu_custom_call.1} parent=1 // pred_fallthru
      _
    %p237 = scmp.eq.s32.totalorder 0, 0
    // Predicated region
    $region122: #{tpu_custom_call.1} parent=1 // pred_check
      %p238 = pneg %p237
    $region123: #{tpu_custom_call.1} parent=1 // pred_check_branch
      %240 = sbr.rel (%p238) target = $region125
    $region124: #{tpu_custom_call.1} parent=1 // pred_region
      %vm241 = vcmask 64512
      %242 = vst.msk [vmem:[#allocation3] sm:$0xff] %vm241, 0.0
      %243 = vst.msk [vmem:[#allocation3 + $0x8] sm:$0xff] %vm241, 0.0
      %v244 = vld [vmem:[#allocation4] sm:$0xf]
      %v245 = vld [vmem:[#allocation4 + $0x4] sm:$0xf]
      %v246 = vld [vmem:[#allocation13] sm:$0xf]
      %v249 = vunpack.c.l.b16 %v244
      %v250 = vunpack.c.l.b16 %v245
      %v251 = vpack.c.b16 %v250, %v249
      %v253 = vsel %vm241, %v251, 0
      %vm255 = vcmask 1043456
      %v257 = vsel %vm255, %v246, 0
      %259 = vmatprep.subr.bf16.mxu0 0
      %260 = vmatpush1.bf16.msra.mxu0 %v257
      %261 = vmatprep.subr.bf16.mxu0 0
      %262 = vmatpush1.bf16.msra.mxu0 0
      %263 = vmatprep.subr.bf16.mxu0 0
      %264 = vmatpush1.bf16.msra.mxu0 0
      %265 = vmatprep.subr.bf16.mxu0 0
      %266 = vmatpush1.bf16.msra.mxu0 0
      %267 = vmatprep.subr.bf16.mxu0 0
      %268 = vmatpush1.bf16.msra.mxu0 0
      %269 = vmatprep.subr.bf16.mxu0 0
      %270 = vmatpush1.bf16.msra.mxu0 0
      %271 = vmatprep.subr.bf16.mxu0 0
      %272 = vmatpush1.bf16.msra.mxu0 0
      %273 = vmatprep.subr.bf16.mxu0 0
      %274 = vmatpush1.bf16.msra.mxu0 0
      %275 = vmatprep.subr.bf16.mxu0 0
      %276 = vmatpush1.bf16.msra.mxu0 0
      %277 = vmatprep.subr.bf16.mxu0 0
      %278 = vmatpush1.bf16.msra.mxu0 0
      %279 = vmatprep.subr.bf16.mxu0 0
      %280 = vmatpush1.bf16.msra.mxu0 0
      %281 = vmatprep.subr.bf16.mxu0 0
      %282 = vmatpush1.bf16.msra.mxu0 0
      %283 = vmatprep.subr.bf16.mxu0 0
      %284 = vmatpush1.bf16.msra.mxu0 0
      %285 = vmatprep.subr.bf16.mxu0 0
      %286 = vmatpush1.bf16.msra.mxu0 0
      %287 = vmatprep.subr.bf16.mxu0 0
      %288 = vmatpush1.bf16.msra.mxu0 0
      %289 = vmatprep.subr.bf16.mxu0 0
      %290 = vmatpush1.bf16.msra.mxu0 0
      %291 = vmatprep.mubr.bf16.mxu0 0
      %292 = vmatmul.mubr.bf16.gmra.mrb[0].mxu0 %v253
      %v293 = vpop.f32.mrb[0].mxu0
      %v294 = vadd.f32 0.0, %v293
      %v295 = vpop.f32.mrb[0].mxu0
      %v296 = vpop.f32.mrb[0].mxu0
      %v297 = vadd.f32 0.0, %v296
      %v298 = vpop.f32.mrb[0].mxu0
      %299 = vdwg.mxu0
      %v300 = vld [vmem:[#allocation15] sm:$0xf]
      %v302 = vsel %vm255, %v300, 0
      %304 = vmatprep.subr.bf16.mxu0 0
      %305 = vmatpush1.bf16.msra.mxu0 %v302
      %306 = vmatprep.subr.bf16.mxu0 0
      %307 = vmatpush1.bf16.msra.mxu0 0
      %308 = vmatprep.subr.bf16.mxu0 0
      %309 = vmatpush1.bf16.msra.mxu0 0
      %310 = vmatprep.subr.bf16.mxu0 0
      %311 = vmatpush1.bf16.msra.mxu0 0
      %312 = vmatprep.subr.bf16.mxu0 0
      %313 = vmatpush1.bf16.msra.mxu0 0
      %314 = vmatprep.subr.bf16.mxu0 0
      %315 = vmatpush1.bf16.msra.mxu0 0
      %316 = vmatprep.subr.bf16.mxu0 0
      %317 = vmatpush1.bf16.msra.mxu0 0
      %318 = vmatprep.subr.bf16.mxu0 0
      %319 = vmatpush1.bf16.msra.mxu0 0
      %320 = vmatprep.subr.bf16.mxu0 0
      %321 = vmatpush1.bf16.msra.mxu0 0
      %322 = vmatprep.subr.bf16.mxu0 0
      %323 = vmatpush1.bf16.msra.mxu0 0
      %324 = vmatprep.subr.bf16.mxu0 0
      %325 = vmatpush1.bf16.msra.mxu0 0
      %326 = vmatprep.subr.bf16.mxu0 0
      %327 = vmatpush1.bf16.msra.mxu0 0
      %328 = vmatprep.subr.bf16.mxu0 0
      %329 = vmatpush1.bf16.msra.mxu0 0
      %330 = vmatprep.subr.bf16.mxu0 0
      %331 = vmatpush1.bf16.msra.mxu0 0
      %332 = vmatprep.subr.bf16.mxu0 0
      %333 = vmatpush1.bf16.msra.mxu0 0
      %334 = vmatprep.subr.bf16.mxu0 0
      %335 = vmatpush1.bf16.msra.mxu0 0
      %336 = vmatprep.mubr.bf16.mxu0 0
      %337 = vmatmul.mubr.bf16.gmra.mrb[0].mxu0 %v253
      %v338 = vpop.f32.mrb[0].mxu0
      %v339 = vadd.f32 0.0, %v338
      %v340 = vpop.f32.mrb[0].mxu0
      %v341 = vpop.f32.mrb[0].mxu0
      %v342 = vadd.f32 0.0, %v341
      %v343 = vpop.f32.mrb[0].mxu0
      %344 = vdwg.mxu0
      %v345 = vpack.c.bf16 %v297, %v294
      %v346 = vpack.c.bf16 %v342, %v339
      %vm347 = vcmask 130048
      %348 = vst.msk [vmem:[#allocation2] sm:$0xff] %vm347, %v345
      %349 = vst.msk [vmem:[#allocation2 + $0x8] sm:$0xff] %vm347, %v346
    $region125: #{tpu_custom_call.1} parent=1 // pred_fallthru
      _
    %v350 = vlaneseq
    %v351 = vand.u32 %v350, 127
    %v352 = vld [vmem:[#allocation9] sm:$0xff]
    %v353 = vld [vmem:[#allocation9 + $0x8] sm:$0xff]
    %v354 = vld [vmem:[#allocation9 + $0x10] sm:$0xff]
    %v355 = vld [vmem:[#allocation9 + $0x18] sm:$0xff]
    %356 = vset.pattern.permute.xlu0 0
    %357 = vperm.xlu0 %356, %v352
    %v358 = vpop.permute.xlu0 %357
    %359 = vset.pattern.permute.xlu0 0
    %360 = vperm.xlu0 %359, %v353
    %v361 = vpop.permute.xlu0 %360
    %362 = vset.pattern.permute.xlu0 0
    %363 = vperm.xlu0 %362, %v354
    %v364 = vpop.permute.xlu0 %363
    %365 = vset.pattern.permute.xlu0 0
    %366 = vperm.xlu0 %365, %v355
    %v367 = vpop.permute.xlu0 %366
    %vm368 = vcmp.eq.s32.totalorder %v351, %v358
    %vm369 = vcmp.eq.s32.totalorder %v351, %v361
    %vm370 = vcmp.eq.s32.totalorder %v351, %v364
    %vm371 = vcmp.eq.s32.totalorder %v351, %v367
    %v372 = vsel %vm368, 1, 0
    %v373 = vsel %vm369, 1, 0
    %v374 = vsel %vm370, 1, 0
    %v375 = vsel %vm371, 1, 0
    %v376 = vcvt.s32.f32 %v372
    %v377 = vcvt.s32.f32 %v373
    %v378 = vcvt.s32.f32 %v374
    %v379 = vcvt.s32.f32 %v375
    %v380 = vld [vmem:[#allocation10] sm:$0xff]
    %v381 = vld [vmem:[#allocation10 + $0x8] sm:$0xff]
    %v382 = vld [vmem:[#allocation10 + $0x10] sm:$0xff]
    %v383 = vld [vmem:[#allocation10 + $0x18] sm:$0xff]
    %384 = vset.pattern.permute.xlu0 0
    %385 = vperm.xlu0 %384, %v380
    %v386 = vpop.permute.xlu0 %385
    %387 = vset.pattern.permute.xlu0 0
    %388 = vperm.xlu0 %387, %v381
    %v389 = vpop.permute.xlu0 %388
    %390 = vset.pattern.permute.xlu0 0
    %391 = vperm.xlu0 %390, %v382
    %v392 = vpop.permute.xlu0 %391
    %393 = vset.pattern.permute.xlu0 0
    %394 = vperm.xlu0 %393, %v383
    %v395 = vpop.permute.xlu0 %394
    %vm396 = vcmp.eq.s32.totalorder %v351, %v386
    %vm397 = vcmp.eq.s32.totalorder %v351, %v389
    %vm398 = vcmp.eq.s32.totalorder %v351, %v392
    %vm399 = vcmp.eq.s32.totalorder %v351, %v395
    %v400 = vsel %vm396, 1, 0
    %v401 = vsel %vm397, 1, 0
    %v402 = vsel %vm398, 1, 0
    %v403 = vsel %vm399, 1, 0
    %v404 = vcvt.s32.f32 %v400
    %v405 = vcvt.s32.f32 %v401
    %v406 = vcvt.s32.f32 %v402
    %v407 = vcvt.s32.f32 %v403
    %v408 = vpack.c.bf16 %v377, %v376
    %v409 = vpack.c.bf16 %v379, %v378
    %414 = vrot.lane.b32.xlu0 %v404, 16
    %v415 = vpop.permute.xlu0 %414
    %416 = vrot.lane.b32.xlu0 %v405, 16
    %v417 = vpop.permute.xlu0 %416
    %418 = vrot.lane.b32.xlu0 %v406, 16
    %v419 = vpop.permute.xlu0 %418
    %420 = vrot.lane.b32.xlu0 %v407, 16
    %v421 = vpop.permute.xlu0 %420
    %vm426 = vcmask 130048
    %v427 = vsel %vm426, %v376, %v415
    %v428 = vsel %vm426, %v377, %v417
    %v429 = vsel %vm426, %v378, %v419
    %v430 = vsel %vm426, %v379, %v421
    %v431 = vpack.c.bf16 %v428, %v427
    %v432 = vpack.c.bf16 %v430, %v429
    %v433 = vld [vmem:[#allocation2] sm:$0xff]
    %v434 = vld [vmem:[#allocation2 + $0x8] sm:$0xff]
    %v435 = vld [vmem:[#allocation7] sm:$0xf]
    %v436 = vld [vmem:[#allocation7 + $0x4] sm:$0xf]
    %v437 = vld [vmem:[#allocation7 + $0x8] sm:$0xf]
    %v438 = vld [vmem:[#allocation7 + $0xc] sm:$0xf]
    %v439 = vld [vmem:[#allocation16] sm:$0x3]
    %v444 = vunpack.c.l.b16 %v435
    %v445 = vunpack.c.l.b16 %v436
    %v446 = vunpack.c.l.b16 %v437
    %v447 = vunpack.c.l.b16 %v438
    %v448 = vpack.c.b16 %v445, %v444
    %v449 = vpack.c.b16 %v447, %v446
    %vm450 = vcmask 31744
    %v452 = vsel %vm450, %v448, 0
    %v455 = vsel %vm450, %v449, 0
    %vm457 = vcmask 1041408
    %v459 = vsel %vm457, %v439, 0
    %461 = vmatprep.subr.bf16.mxu0 0
    %462 = vmatpush1.bf16.msra.mxu0 %v459
    %463 = vmatprep.subr.bf16.mxu0 0
    %464 = vmatpush1.bf16.msra.mxu0 0
    %465 = vmatprep.subr.bf16.mxu0 0
    %466 = vmatpush1.bf16.msra.mxu0 0
    %467 = vmatprep.subr.bf16.mxu0 0
    %468 = vmatpush1.bf16.msra.mxu0 0
    %469 = vmatprep.subr.bf16.mxu0 0
    %470 = vmatpush1.bf16.msra.mxu0 0
    %471 = vmatprep.subr.bf16.mxu0 0
    %472 = vmatpush1.bf16.msra.mxu0 0
    %473 = vmatprep.subr.bf16.mxu0 0
    %474 = vmatpush1.bf16.msra.mxu0 0
    %475 = vmatprep.subr.bf16.mxu0 0
    %476 = vmatpush1.bf16.msra.mxu0 0
    %477 = vmatprep.subr.bf16.mxu0 0
    %478 = vmatpush1.bf16.msra.mxu0 0
    %479 = vmatprep.subr.bf16.mxu0 0
    %480 = vmatpush1.bf16.msra.mxu0 0
    %481 = vmatprep.subr.bf16.mxu0 0
    %482 = vmatpush1.bf16.msra.mxu0 0
    %483 = vmatprep.subr.bf16.mxu0 0
    %484 = vmatpush1.bf16.msra.mxu0 0
    %485 = vmatprep.subr.bf16.mxu0 0
    %486 = vmatpush1.bf16.msra.mxu0 0
    %487 = vmatprep.subr.bf16.mxu0 0
    %488 = vmatpush1.bf16.msra.mxu0 0
    %489 = vmatprep.subr.bf16.mxu0 0
    %490 = vmatpush1.bf16.msra.mxu0 0
    %491 = vmatprep.subr.bf16.mxu0 0
    %492 = vmatpush1.bf16.msra.mxu0 0
    %493 = vmatprep.mubr.bf16.mxu0 0
    %494 = vmatmul.mubr.bf16.gmra.mrb[0].mxu0 %v452
    %v495 = vpop.f32.mrb[0].mxu0
    %v496 = vadd.f32 0.0, %v495
    %v497 = vpop.f32.mrb[0].mxu0
    %v498 = vpop.f32.mrb[0].mxu0
    %v499 = vadd.f32 0.0, %v498
    %v500 = vpop.f32.mrb[0].mxu0
    %501 = vmatprep.mubr.bf16.mxu0 0
    %502 = vmatmul.mubr.bf16.gmra.mrb[0].mxu0 %v455
    %v503 = vpop.f32.mrb[0].mxu0
    %v504 = vadd.f32 0.0, %v503
    %v505 = vpop.f32.mrb[0].mxu0
    %v506 = vpop.f32.mrb[0].mxu0
    %v507 = vadd.f32 0.0, %v506
    %v508 = vpop.f32.mrb[0].mxu0
    %509 = vdwg.mxu0
    %vm510 = vcmask 261120
    %v512 = vsel %vm510, %v431, 0
    %v515 = vsel %vm510, %v432, 0
    %517 = vmatprep.subr.bf16.mxu0 0
    %518 = vmatpush1.bf16.msra.mxu0 %v433
    %519 = vmatprep.subr.bf16.mxu0 0
    %520 = vmatpush1.bf16.msra.mxu0 %v434
    %521 = vmatprep.subr.bf16.mxu0 0
    %522 = vmatpush1.bf16.msra.mxu0 0
    %523 = vmatprep.subr.bf16.mxu0 0
    %524 = vmatpush1.bf16.msra.mxu0 0
    %525 = vmatprep.subr.bf16.mxu0 0
    %526 = vmatpush1.bf16.msra.mxu0 0
    %527 = vmatprep.subr.bf16.mxu0 0
    %528 = vmatpush1.bf16.msra.mxu0 0
    %529 = vmatprep.subr.bf16.mxu0 0
    %530 = vmatpush1.bf16.msra.mxu0 0
    %531 = vmatprep.subr.bf16.mxu0 0
    %532 = vmatpush1.bf16.msra.mxu0 0
    %533 = vmatprep.subr.bf16.mxu0 0
    %534 = vmatpush1.bf16.msra.mxu0 0
    %535 = vmatprep.subr.bf16.mxu0 0
    %536 = vmatpush1.bf16.msra.mxu0 0
    %537 = vmatprep.subr.bf16.mxu0 0
    %538 = vmatpush1.bf16.msra.mxu0 0
    %539 = vmatprep.subr.bf16.mxu0 0
    %540 = vmatpush1.bf16.msra.mxu0 0
    %541 = vmatprep.subr.bf16.mxu0 0
    %542 = vmatpush1.bf16.msra.mxu0 0
    %543 = vmatprep.subr.bf16.mxu0 0
    %544 = vmatpush1.bf16.msra.mxu0 0
    %545 = vmatprep.subr.bf16.mxu0 0
    %546 = vmatpush1.bf16.msra.mxu0 0
    %547 = vmatprep.subr.bf16.mxu0 0
    %548 = vmatpush1.bf16.msra.mxu0 0
    %549 = vmatprep.mubr.bf16.mxu0 0
    %550 = vmatmul.mubr.bf16.gmra.mrb[0].mxu0 %v512
    %v551 = vpop.f32.mrb[0].mxu0
    %v552 = vadd.f32 %v496, %v551
    %v553 = vpop.f32.mrb[0].mxu0
    %v554 = vpop.f32.mrb[0].mxu0
    %v555 = vadd.f32 %v499, %v554
    %v556 = vpop.f32.mrb[0].mxu0
    %557 = vmatprep.mubr.bf16.mxu0 0
    %558 = vmatmul.mubr.bf16.gmra.mrb[0].mxu0 %v515
    %v559 = vpop.f32.mrb[0].mxu0
    %v560 = vadd.f32 %v504, %v559
    %v561 = vpop.f32.mrb[0].mxu0
    %v562 = vpop.f32.mrb[0].mxu0
    %v563 = vadd.f32 %v507, %v562
    %v564 = vpop.f32.mrb[0].mxu0
    %565 = vdwg.mxu0
    %v566 = vld [vmem:[#allocation18] sm:$0x1]
    %v568 = vlaneseq
    %v569 = vshrl.u32 %v568, 7
    %v570 = vsub.s32 0, %v569
    %v571 = vrot.slane %v566, %v570
    %v573 = vadd.f32 %v552, %v571
    %v574 = vadd.f32 %v555, %v571
    %v575 = vadd.f32 %v560, %v571
    %v576 = vadd.f32 %v563, %v571
    %v577 = vand.u32 2147483647, %v573
    %v578 = vand.u32 2147483647, %v574
    %v579 = vand.u32 2147483647, %v575
    %v580 = vand.u32 2147483647, %v576
    %v581 = vsub.f32 0.0, %v577
    %v582 = vsub.f32 0.0, %v578
    %v583 = vsub.f32 0.0, %v579
    %v584 = vsub.f32 0.0, %v580
    %v585 = vmul.f32 %v581, 1.442695
    %v586 = vpow.pop %v585
    %v587 = vmul.f32 %v582, 1.442695
    %v588 = vpow.pop %v587
    %v589 = vmul.f32 %v583, 1.442695
    %v590 = vpow.pop %v589
    %v591 = vmul.f32 %v584, 1.442695
    %v592 = vpow.pop %v591
    %v593 = vadd.f32 %v586, 1.0
    %v594 = vadd.f32 %v588, 1.0
    %v595 = vadd.f32 %v590, 1.0
    %v596 = vadd.f32 %v592, 1.0
    %v597 = vrcp.pop %v593
    %v598 = vrcp.pop %v594
    %v599 = vrcp.pop %v595
    %v600 = vrcp.pop %v596
    %vm601 = vcmp.ge.f32.partialorder %v573, 0.0
    %vm602 = vcmp.ge.f32.partialorder %v574, 0.0
    %vm603 = vcmp.ge.f32.partialorder %v575, 0.0
    %vm604 = vcmp.ge.f32.partialorder %v576, 0.0
    %v605 = vmul.f32 %v586, %v597
    %v606 = vmul.f32 %v588, %v598
    %v607 = vmul.f32 %v590, %v599
    %v608 = vmul.f32 %v592, %v600
    %v609 = vsel %vm601, %v597, %v605
    %v610 = vsel %vm602, %v598, %v606
    %v611 = vsel %vm603, %v599, %v607
    %v612 = vsel %vm604, %v600, %v608
    %v613 = vmax.f32 %v573, 0.0
    %v614 = vmax.f32 %v574, 0.0
    %v615 = vmax.f32 %v575, 0.0
    %v616 = vmax.f32 %v576, 0.0
    %vm617 = vcmp.ne.f32.partialorder %v573, %v573
    %vm618 = vcmp.ne.f32.partialorder %v574, %v574
    %vm619 = vcmp.ne.f32.partialorder %v575, %v575
    %vm620 = vcmp.ne.f32.partialorder %v576, %v576
    %v621 = vadd.f32 %v573, 0.0
    %v622 = vadd.f32 %v574, 0.0
    %v623 = vadd.f32 %v575, 0.0
    %v624 = vadd.f32 %v576, 0.0
    %v625 = vadd.f32 %v586, 1.0
    %v626 = vlog2.pop %v625
    %v627 = vmul.f32 %v626, 0.6931472
    %v628 = vmul.f32 -0.5, %v586
    %v629 = vadd.f32 %v628, 1.0
    %v630 = vmul.f32 %v629, %v586
    %v631 = vand.u32 2147483647, %v586
    %vm632 = vcmp.lt.f32.partialorder %v631, 0.0004427343
    %v633 = vsel %vm632, %v630, %v627
    %v634 = vadd.f32 %v588, 1.0
    %v635 = vlog2.pop %v634
    %v636 = vmul.f32 %v635, 0.6931472
    %v637 = vmul.f32 -0.5, %v588
    %v638 = vadd.f32 %v637, 1.0
    %v639 = vmul.f32 %v638, %v588
    %v640 = vand.u32 2147483647, %v588
    %vm641 = vcmp.lt.f32.partialorder %v640, 0.0004427343
    %v642 = vsel %vm641, %v639, %v636
    %v643 = vadd.f32 %v590, 1.0
    %v644 = vlog2.pop %v643
    %v645 = vmul.f32 %v644, 0.6931472
    %v646 = vmul.f32 -0.5, %v590
    %v647 = vadd.f32 %v646, 1.0
    %v648 = vmul.f32 %v647, %v590
    %v649 = vand.u32 2147483647, %v590
    %vm650 = vcmp.lt.f32.partialorder %v649, 0.0004427343
    %v651 = vsel %vm650, %v648, %v645
    %v652 = vadd.f32 %v592, 1.0
    %v653 = vlog2.pop %v652
    %v654 = vmul.f32 %v653, 0.6931472
    %v655 = vmul.f32 -0.5, %v592
    %v656 = vadd.f32 %v655, 1.0
    %v657 = vmul.f32 %v656, %v592
    %v658 = vand.u32 2147483647, %v592
    %vm659 = vcmp.lt.f32.partialorder %v658, 0.0004427343
    %v660 = vsel %vm659, %v657, %v654
    %v661 = vadd.f32 %v613, %v633
    %v662 = vadd.f32 %v614, %v642
    %v663 = vadd.f32 %v615, %v651
    %v664 = vadd.f32 %v616, %v660
    %v665 = vsel %vm617, %v621, %v661
    %v666 = vsel %vm618, %v622, %v662
    %v667 = vsel %vm619, %v623, %v663
    %v668 = vsel %vm620, %v624, %v664
    %673 = vrot.lane.b32.xlu0 %v665, 120
    %v674 = vpop.permute.xlu0 %673
    %675 = vrot.lane.b32.xlu0 %v666, 120
    %v676 = vpop.permute.xlu0 %675
    %677 = vrot.lane.b32.xlu0 %v667, 120
    %v678 = vpop.permute.xlu0 %677
    %679 = vrot.lane.b32.xlu0 %v668, 120
    %v680 = vpop.permute.xlu0 %679
    %v685 = vmul.f32 %v609, %v674
    %v686 = vmul.f32 %v610, %v676
    %v687 = vmul.f32 %v611, %v678
    %v688 = vmul.f32 %v612, %v680
    %v689 = vpack.c.bf16 %v686, %v685
    %v690 = vpack.c.bf16 %v688, %v687
    %v691 = vld [vmem:[#allocation3] sm:$0xff]
    %v692 = vld [vmem:[#allocation3 + $0x8] sm:$0xff]
    %693 = vxpose.xlu0.c.b16.start [1/8] %v408, 128
    %694 = vxpose.xlu0.c.b16.cont [2/8] %v409, 128
    %695 = vxpose.xlu0.c.b16.cont [3/8] 0, 128
    %696 = vxpose.xlu0.c.b16.cont [4/8] 0, 128
    %697 = vxpose.xlu0.c.b16.cont [5/8] 0, 128
    %698 = vxpose.xlu0.c.b16.cont [6/8] 0, 128
    %699 = vxpose.xlu0.c.b16.cont [7/8] 0, 128
    %700 = vxpose.xlu0.c.b16.end [8/8] 0, 128
    %v701 = vpop.trf.xlu0
    %v702 = vpop.trf.xlu0
    %v703 = vpop.trf.xlu0
    %v704 = vpop.trf.xlu0
    %v705 = vpop.trf.xlu0
    %v706 = vpop.trf.xlu0
    %v707 = vpop.trf.xlu0
    %v708 = vpop.trf.xlu0
    %v710 = vsel %vm510, %v701, 0
    %712 = vmatprep.subr.bf16.mxu0 0
    %713 = vmatpush1.bf16.msra.mxu0 %v689
    %714 = vmatprep.subr.bf16.mxu0 0
    %715 = vmatpush1.bf16.msra.mxu0 %v690
    %716 = vmatprep.subr.bf16.mxu0 0
    %717 = vmatpush1.bf16.msra.mxu0 0
    %718 = vmatprep.subr.bf16.mxu0 0
    %719 = vmatpush1.bf16.msra.mxu0 0
    %720 = vmatprep.subr.bf16.mxu0 0
    %721 = vmatpush1.bf16.msra.mxu0 0
    %722 = vmatprep.subr.bf16.mxu0 0
    %723 = vmatpush1.bf16.msra.mxu0 0
    %724 = vmatprep.subr.bf16.mxu0 0
    %725 = vmatpush1.bf16.msra.mxu0 0
    %726 = vmatprep.subr.bf16.mxu0 0
    %727 = vmatpush1.bf16.msra.mxu0 0
    %728 = vmatprep.subr.bf16.mxu0 0
    %729 = vmatpush1.bf16.msra.mxu0 0
    %730 = vmatprep.subr.bf16.mxu0 0
    %731 = vmatpush1.bf16.msra.mxu0 0
    %732 = vmatprep.subr.bf16.mxu0 0
    %733 = vmatpush1.bf16.msra.mxu0 0
    %734 = vmatprep.subr.bf16.mxu0 0
    %735 = vmatpush1.bf16.msra.mxu0 0
    %736 = vmatprep.subr.bf16.mxu0 0
    %737 = vmatpush1.bf16.msra.mxu0 0
    %738 = vmatprep.subr.bf16.mxu0 0
    %739 = vmatpush1.bf16.msra.mxu0 0
    %740 = vmatprep.subr.bf16.mxu0 0
    %741 = vmatpush1.bf16.msra.mxu0 0
    %742 = vmatprep.subr.bf16.mxu0 0
    %743 = vmatpush1.bf16.msra.mxu0 0
    %744 = vmatprep.mubr.bf16.mxu0 0
    %745 = vmatmul.mubr.bf16.gmra.mrb[0].mxu0 %v710
    %v746 = vpop.f32.mrb[0].mxu0
    %v747 = vadd.f32 0.0, %v746
    %v748 = vpop.f32.mrb[0].mxu0
    %v749 = vpop.f32.mrb[0].mxu0
    %v750 = vadd.f32 0.0, %v749
    %v751 = vpop.f32.mrb[0].mxu0
    %752 = vdwg.mxu0
    %v753 = vadd.f32 %v691, %v747
    %v754 = vadd.f32 %v692, %v750
    %vm755 = vcmask 64512
    %756 = vst.msk [vmem:[#allocation3] sm:$0xff] %vm755, %v753
    %757 = vst.msk [vmem:[#allocation3 + $0x8] sm:$0xff] %vm755, %v754
    // Predicated region
    $region126: #{tpu_custom_call.1} parent=1 // pred_check
      %p758 = pneg %p237
    $region127: #{tpu_custom_call.1} parent=1 // pred_check_branch
      %760 = sbr.rel (%p758) target = $region129
    $region128: #{tpu_custom_call.1} parent=1 // pred_region
      %v761 = vld [vmem:[#allocation4] sm:$0xf]
      %v762 = vld [vmem:[#allocation4 + $0x4] sm:$0xf]
      %v763 = vunpack.c.l.bf16 %v761
      %v764 = vunpack.c.l.bf16 %v762
      %v765 = vld [vmem:[#allocation3] sm:$0xff]
      %v766 = vld [vmem:[#allocation3 + $0x8] sm:$0xff]
      %v767 = vadd.f32 %v763, %v765
      %v768 = vadd.f32 %v764, %v766
      %v769 = vpack.c.bf16 %v768, %v767
      %v770 = vld [vmem:[#allocation19] sm:$0xf]
      %v771 = vld [vmem:[#allocation21] sm:$0x1]
      %v773 = vlaneseq
      %v774 = vshrl.u32 %v773, 7
      %v775 = vsub.s32 0, %v774
      %v776 = vrot.slane %v771, %v775
      %v779 = vsel %vm755, %v769, 0
      %vm781 = vcmask 1043456
      %v783 = vsel %vm781, %v770, 0
      %785 = vmatprep.subr.bf16.mxu0 0
      %786 = vmatpush1.bf16.msra.mxu0 %v783
      %787 = vmatprep.subr.bf16.mxu0 0
      %788 = vmatpush1.bf16.msra.mxu0 0
      %789 = vmatprep.subr.bf16.mxu0 0
      %790 = vmatpush1.bf16.msra.mxu0 0
      %791 = vmatprep.subr.bf16.mxu0 0
      %792 = vmatpush1.bf16.msra.mxu0 0
      %793 = vmatprep.subr.bf16.mxu0 0
      %794 = vmatpush1.bf16.msra.mxu0 0
      %795 = vmatprep.subr.bf16.mxu0 0
      %796 = vmatpush1.bf16.msra.mxu0 0
      %797 = vmatprep.subr.bf16.mxu0 0
      %798 = vmatpush1.bf16.msra.mxu0 0
      %799 = vmatprep.subr.bf16.mxu0 0
      %800 = vmatpush1.bf16.msra.mxu0 0
      %801 = vmatprep.subr.bf16.mxu0 0
      %802 = vmatpush1.bf16.msra.mxu0 0
      %803 = vmatprep.subr.bf16.mxu0 0
      %804 = vmatpush1.bf16.msra.mxu0 0
      %805 = vmatprep.subr.bf16.mxu0 0
      %806 = vmatpush1.bf16.msra.mxu0 0
      %807 = vmatprep.subr.bf16.mxu0 0
      %808 = vmatpush1.bf16.msra.mxu0 0
      %809 = vmatprep.subr.bf16.mxu0 0
      %810 = vmatpush1.bf16.msra.mxu0 0
      %811 = vmatprep.subr.bf16.mxu0 0
      %812 = vmatpush1.bf16.msra.mxu0 0
      %813 = vmatprep.subr.bf16.mxu0 0
      %814 = vmatpush1.bf16.msra.mxu0 0
      %815 = vmatprep.subr.bf16.mxu0 0
      %816 = vmatpush1.bf16.msra.mxu0 0
      %817 = vmatprep.mubr.bf16.mxu0 0
      %818 = vmatmul.mubr.bf16.gmra.mrb[0].mxu0 %v779
      %v819 = vpop.f32.mrb[0].mxu0
      %v820 = vadd.f32 %v776, %v819
      %v821 = vpop.f32.mrb[0].mxu0
      %v822 = vpop.f32.mrb[0].mxu0
      %v823 = vadd.f32 %v776, %v822
      %v824 = vpop.f32.mrb[0].mxu0
      %825 = vdwg.mxu0
      %v826 = vmax.f32 %v820, 0.0
      %v827 = vmax.f32 %v823, 0.0
      %v828 = vlaneseq
      %v829 = vshrl.u32 %v828, 7
      %v830 = vld [vmem:[#allocation12] sm:$0x1]
      %v831 = vlaneseq
      %v832 = vshrl.u32 %v831, 7
      %v833 = vsub.s32 0, %v832
      %v834 = vrot.slane %v830, %v833
      %vm835 = vcmp.eq.s32.totalorder %v829, %v834
      %v836 = vsel %vm835, 1, 0
      %v837 = vcvt.s32.f32 %v836
      %v838 = vpack.c.bf16 %v837, %v837
      %v839 = vpack.c.bf16 %v827, %v826
      %v841 = vsel %vm426, %v838, 0
      %843 = vmatprep.subr.bf16.mxu0 0
      %844 = vmatpush1.bf16.msra.mxu0 %v839
      %845 = vmatprep.subr.bf16.mxu0 0
      %846 = vmatpush1.bf16.msra.mxu0 0
      %847 = vmatprep.subr.bf16.mxu0 0
      %848 = vmatpush1.bf16.msra.mxu0 0
      %849 = vmatprep.subr.bf16.mxu0 0
      %850 = vmatpush1.bf16.msra.mxu0 0
      %851 = vmatprep.subr.bf16.mxu0 0
      %852 = vmatpush1.bf16.msra.mxu0 0
      %853 = vmatprep.subr.bf16.mxu0 0
      %854 = vmatpush1.bf16.msra.mxu0 0
      %855 = vmatprep.subr.bf16.mxu0 0
      %856 = vmatpush1.bf16.msra.mxu0 0
      %857 = vmatprep.subr.bf16.mxu0 0
      %858 = vmatpush1.bf16.msra.mxu0 0
      %859 = vmatprep.subr.bf16.mxu0 0
      %860 = vmatpush1.bf16.msra.mxu0 0
      %861 = vmatprep.subr.bf16.mxu0 0
      %862 = vmatpush1.bf16.msra.mxu0 0
      %863 = vmatprep.subr.bf16.mxu0 0
      %864 = vmatpush1.bf16.msra.mxu0 0
      %865 = vmatprep.subr.bf16.mxu0 0
      %866 = vmatpush1.bf16.msra.mxu0 0
      %867 = vmatprep.subr.bf16.mxu0 0
      %868 = vmatpush1.bf16.msra.mxu0 0
      %869 = vmatprep.subr.bf16.mxu0 0
      %870 = vmatpush1.bf16.msra.mxu0 0
      %871 = vmatprep.subr.bf16.mxu0 0
      %872 = vmatpush1.bf16.msra.mxu0 0
      %873 = vmatprep.subr.bf16.mxu0 0
      %874 = vmatpush1.bf16.msra.mxu0 0
      %875 = vmatprep.mubr.bf16.mxu0 0
      %876 = vmatmul.mubr.bf16.gmra.mrb[0].mxu0 %v841
      %v877 = vpop.f32.mrb[0].mxu0
      %v878 = vadd.f32 0.0, %v877
      %v879 = vpop.f32.mrb[0].mxu0
      %v880 = vpop.f32.mrb[0].mxu0
      %v881 = vpop.f32.mrb[0].mxu0
      %882 = vdwg.mxu0
      %v883 = vpack.c.bf16 %v878, %v878
      %v884 = vld [vmem:[#allocation22] sm:$0xf]
      %v885 = vld [vmem:[#allocation22 + $0x4] sm:$0xf]
      %v886 = vld [vmem:[#allocation22 + $0x8] sm:$0xf]
      %v887 = vld [vmem:[#allocation22 + $0xc] sm:$0xf]
      %v888 = vld [vmem:[#allocation24] sm:$0x1]
      %v890 = vlaneseq
      %v891 = vshrl.u32 %v890, 7
      %v892 = vsub.s32 0, %v891
      %v893 = vrot.slane %v888, %v892
      %v899 = vunpack.c.l.b16 %v884
      %v900 = vunpack.c.l.b16 %v885
      %v901 = vunpack.c.l.b16 %v886
      %v902 = vunpack.c.l.b16 %v887
      %v903 = vpack.c.b16 %v900, %v899
      %v904 = vpack.c.b16 %v902, %v901
      %v908 = vsel %vm510, %v883, 0
      %910 = vmatprep.subr.bf16.mxu0 0
      %911 = vmatpush1.bf16.msra.mxu0 %v903
      %912 = vmatprep.subr.bf16.mxu0 0
      %913 = vmatpush1.bf16.msra.mxu0 %v904
      %914 = vmatprep.subr.bf16.mxu0 0
      %915 = vmatpush1.bf16.msra.mxu0 0
      %916 = vmatprep.subr.bf16.mxu0 0
      %917 = vmatpush1.bf16.msra.mxu0 0
      %918 = vmatprep.subr.bf16.mxu0 0
      %919 = vmatpush1.bf16.msra.mxu0 0
      %920 = vmatprep.subr.bf16.mxu0 0
      %921 = vmatpush1.bf16.msra.mxu0 0
      %922 = vmatprep.subr.bf16.mxu0 0
      %923 = vmatpush1.bf16.msra.mxu0 0
      %924 = vmatprep.subr.bf16.mxu0 0
      %925 = vmatpush1.bf16.msra.mxu0 0
      %926 = vmatprep.subr.bf16.mxu0 0
      %927 = vmatpush1.bf16.msra.mxu0 0
      %928 = vmatprep.subr.bf16.mxu0 0
      %929 = vmatpush1.bf16.msra.mxu0 0
      %930 = vmatprep.subr.bf16.mxu0 0
      %931 = vmatpush1.bf16.msra.mxu0 0
      %932 = vmatprep.subr.bf16.mxu0 0
      %933 = vmatpush1.bf16.msra.mxu0 0
      %934 = vmatprep.subr.bf16.mxu0 0
      %935 = vmatpush1.bf16.msra.mxu0 0
      %936 = vmatprep.subr.bf16.mxu0 0
      %937 = vmatpush1.bf16.msra.mxu0 0
      %938 = vmatprep.subr.bf16.mxu0 0
      %939 = vmatpush1.bf16.msra.mxu0 0
      %940 = vmatprep.subr.bf16.mxu0 0
      %941 = vmatpush1.bf16.msra.mxu0 0
      %942 = vmatprep.mubr.bf16.mxu0 0
      %943 = vmatmul.mubr.bf16.gmra.mrb[0].mxu0 %v908
      %v944 = vpop.f32.mrb[0].mxu0
      %v945 = vadd.f32 %v893, %v944
      %v946 = vpop.f32.mrb[0].mxu0
      %v947 = vpop.f32.mrb[0].mxu0
      %v948 = vpop.f32.mrb[0].mxu0
      %949 = vdwg.mxu0
      %v950 = vmax.f32 %v945, 0.0
      %v951 = vpack.c.bf16 %v950, %v950
      %v952 = vld [vmem:[#allocation25] sm:$0xf]
      %v953 = vld [vmem:[#allocation25 + $0x4] sm:$0xf]
      %v954 = vld [vmem:[#allocation27] sm:$0x1]
      %v956 = vlaneseq
      %v957 = vshrl.u32 %v956, 7
      %v958 = vsub.s32 0, %v957
      %v959 = vrot.slane %v954, %v958
      %v963 = vunpack.c.l.b16 %v952
      %v964 = vunpack.c.l.b16 %v953
      %v965 = vpack.c.b16 %v964, %v963
      %v968 = vsel %vm426, %v951, 0
      %970 = vmatprep.subr.bf16.mxu0 0
      %971 = vmatpush1.bf16.msra.mxu0 %v965
      %972 = vmatprep.subr.bf16.mxu0 0
      %973 = vmatpush1.bf16.msra.mxu0 0
      %974 = vmatprep.subr.bf16.mxu0 0
      %975 = vmatpush1.bf16.msra.mxu0 0
      %976 = vmatprep.subr.bf16.mxu0 0
      %977 = vmatpush1.bf16.msra.mxu0 0
      %978 = vmatprep.subr.bf16.mxu0 0
      %979 = vmatpush1.bf16.msra.mxu0 0
      %980 = vmatprep.subr.bf16.mxu0 0
      %981 = vmatpush1.bf16.msra.mxu0 0
      %982 = vmatprep.subr.bf16.mxu0 0
      %983 = vmatpush1.bf16.msra.mxu0 0
      %984 = vmatprep.subr.bf16.mxu0 0
      %985 = vmatpush1.bf16.msra.mxu0 0
      %986 = vmatprep.subr.bf16.mxu0 0
      %987 = vmatpush1.bf16.msra.mxu0 0
      %988 = vmatprep.subr.bf16.mxu0 0
      %989 = vmatpush1.bf16.msra.mxu0 0
      %990 = vmatprep.subr.bf16.mxu0 0
      %991 = vmatpush1.bf16.msra.mxu0 0
      %992 = vmatprep.subr.bf16.mxu0 0
      %993 = vmatpush1.bf16.msra.mxu0 0
      %994 = vmatprep.subr.bf16.mxu0 0
      %995 = vmatpush1.bf16.msra.mxu0 0
      %996 = vmatprep.subr.bf16.mxu0 0
      %997 = vmatpush1.bf16.msra.mxu0 0
      %998 = vmatprep.subr.bf16.mxu0 0
      %999 = vmatpush1.bf16.msra.mxu0 0
      %1000 = vmatprep.subr.bf16.mxu0 0
      %1001 = vmatpush1.bf16.msra.mxu0 0
      %1002 = vmatprep.mubr.bf16.mxu0 0
      %1003 = vmatmul.mubr.bf16.gmra.mrb[0].mxu0 %v968
      %v1004 = vpop.f32.mrb[0].mxu0
      %v1005 = vadd.f32 %v959, %v1004
      %v1006 = vpop.f32.mrb[0].mxu0
      %v1007 = vpop.f32.mrb[0].mxu0
      %v1008 = vpop.f32.mrb[0].mxu0
      %1009 = vdwg.mxu0
      %1010 = vst [vmem:[#allocation28] sm:$0x3] %v1005
    $region129: #{tpu_custom_call.1} parent=1 // pred_fallthru
      _
    // Predicated region
    $region130: #{tpu_custom_call.1} parent=1 // pred_check
      _
    $region131: #{tpu_custom_call.1} parent=1 // pred_check_branch
      %1012 = sbr.rel (0) target = $region133
    $region132: #{tpu_custom_call.1} parent=1 // pred_region
      %s1014 = ssub.s32 32, 32
      %1015 = vsyncadd [#allocation6], %s1014
      %s1017 = sshll.u32 [#allocation28], 4
      %s1018 = int_to_ptr.vmem [resolvable:$true] %s1017
      %1020 = dma.vmem_to_hbm [thread:$0]  %s1018, 32, %s15, [#allocation6]
    $region133: #{tpu_custom_call.1} parent=1 // pred_fallthru
      _
    // Predicated region
    $region134: #{tpu_custom_call.1} parent=1 // pred_check
      _
    $region135: #{tpu_custom_call.1} parent=1 // pred_check_branch
      %1022 = sbr.rel (0) target = $region137
    $region136: #{tpu_custom_call.1} parent=1 // pred_region
      %1023 = dma.done [#allocation6], 32
    $region137: #{tpu_custom_call.1} parent=1 // pred_fallthru
      _
    %1024 = vsyncpa [#allocation5], 1
    %1025 = vsyncpa [#allocation8], 1
    %1026 = vsyncpa [#allocation11], 1
    %1027 = vsyncpa [#allocation14], 1
    %1028 = vsyncpa [#allocation17], 1
    %1029 = vsyncpa [#allocation20], 1
    %1030 = vsyncpa [#allocation23], 1
    %1031 = vsyncpa [#allocation26], 1
    %1032 = vsyncpa [#allocation6], 1

</llo_original>
